<compile_context>
chip_gen: v6e
topology: v6e:2x2x1
jax: 0.10.0
libtpu: 0.0.40
codegen_flags: <defaults>
</compile_context>

<pallas_src>
import functools

import numpy as np
import jax
import jax.numpy as jnp
from jax import lax
from jax.experimental import pallas as pl
from jax.experimental.pallas import tpu as pltpu

_LANE = 128


def _round_up(x, m):
    return ((x + m - 1) // m) * m


def _pick_unroll(n_chunks):
    # Full unroll for short loops; otherwise the largest divisor of the trip
    # count among (8, 4, 2) so the scan-based unrolling has no remainder.
    if n_chunks <= 8:
        return max(n_chunks, 1)
    for u in (8, 4, 2):
        if n_chunks % u == 0:
            return u
    return 1


def _chamfer_kernel(t_ref, s_ref, out_ref, *, n_chunks, unroll):
    # t_ref:   (TM, 3)             template tile (sublanes = template points)
    # s_ref:   (n_chunks, 3, 128)  scan tile, pre-chunked 128 points per chunk
    # out_ref: (TM, 128)           lane-wide running min; block index is (i,0)
    #                              for every scan step -> resident accumulator
    j = pl.program_id(1)

    @pl.when(j == 0)
    def _():
        out_ref[...] = jnp.full(out_ref.shape, jnp.inf, dtype=out_ref.dtype)

    tm = t_ref.shape[0]
    t = t_ref[...]                                          # (TM, 3)
    # Hoist the template lane-broadcasts out of the chunk loop: 3 relayouts
    # per grid step instead of 3 per 128-lane chunk.
    t0 = jnp.broadcast_to(t[:, 0:1], (tm, _LANE))
    t1 = jnp.broadcast_to(t[:, 1:2], (tm, _LANE))
    t2 = jnp.broadcast_to(t[:, 2:3], (tm, _LANE))

    def body(c, running):
        s = s_ref[c]                                        # (3, 128)
        d0 = t0 - s[0:1, :]                                 # sublane bcast
        d1 = t1 - s[1:2, :]
        d2 = t2 - s[2:3, :]
        d = d0 * d0 + d1 * d1 + d2 * d2                     # (TM, 128), VPU
        return jnp.minimum(running, d)                      # elementwise fold

    tile_min = lax.fori_loop(
        0, n_chunks, body,
        jnp.full((tm, _LANE), jnp.inf, dtype=jnp.float32),
        unroll=unroll)

    # Lane-dense, unmasked accumulator update; the cross-lane reduce happens
    # once in the wrapper.
    out_ref[...] = jnp.minimum(out_ref[...], tile_min)


def chamfer_data_loss(scan_vertices, template_vertices, *, tm=256, tn=4096):
    """Directional Chamfer loss: sum over template points of the squared
    distance to the nearest scan point
    (== chamfer_dist(scan, template)[1].sum())."""
    scan = jnp.asarray(scan_vertices, jnp.float32)          # (N, 3)
    templ = jnp.asarray(template_vertices, jnp.float32)     # (M, 3)
    N = scan.shape[0]
    M = templ.shape[0]

    # ---- template (sublane) tiling ----
    m8 = _round_up(M, 8)
    tm_eff = min(_round_up(tm, 8), m8)
    if tm_eff == m8 and m8 >= 16:
        # Keep >= 2 template tiles so the "parallel" axis can shard across
        # both TensorCores on v7x instead of leaving one idle.
        tm_eff = _round_up((m8 + 1) // 2, 8)
    M_pad = _round_up(M, tm_eff)

    # ---- scan (lane) tiling ----
    n128 = _round_up(N, _LANE)
    tn_eff = min(_round_up(tn, _LANE), n128)                # multiple of 128
    N_pad = _round_up(N, tn_eff)
    n_chunks = tn_eff // _LANE                              # chunks per tile
    total_chunks = N_pad // _LANE

    # Pad template with zeros (padded rows are sliced off before the sum);
    # pad the scan with copies of a real scan point so mins are unaffected.
    templ_p = templ
    if M_pad > M:
        templ_p = jnp.concatenate(
            [templ, jnp.zeros((M_pad - M, 3), jnp.float32)], axis=0)
    scan_p = scan
    if N_pad > N:
        scan_p = jnp.concatenate(
            [scan, jnp.broadcast_to(scan[:1], (N_pad - N, 3))], axis=0)

    # Re-layout the scan as (total_chunks, 3, 128): the in-kernel loop then
    # indexes whole chunks on the leading axis (no dynamic lane slicing).
    s_blocks = scan_p.T.reshape(3, total_chunks, _LANE).transpose(1, 0, 2)

    grid = (M_pad // tm_eff, N_pad // tn_eff)
    kernel = functools.partial(_chamfer_kernel, n_chunks=n_chunks,
                               unroll=_pick_unroll(n_chunks))

    per_point_lanes = pl.pallas_call(
        kernel,
        out_shape=jax.ShapeDtypeStruct((M_pad, _LANE), jnp.float32),
        grid=grid,
        in_specs=[
            pl.BlockSpec((tm_eff, 3), lambda i, j: (i, 0)),
            pl.BlockSpec((n_chunks, 3, _LANE), lambda i, j: (j, 0, 0)),
        ],
        out_specs=pl.BlockSpec((tm_eff, _LANE), lambda i, j: (i, 0)),
        compiler_params=pltpu.CompilerParams(
            dimension_semantics=("parallel", "arbitrary")),
    )(templ_p, s_blocks)

    # Single cross-lane reduce + final sum, outside the hot loop.
    return jnp.sum(jnp.min(per_point_lanes[:M, :], axis=1))


def reference_data_loss(scan, templ):
    """Pure-JAX reference: sum_j min_i ||templ_j - scan_i||^2."""
    d2 = jnp.sum((templ[:, None, :] - scan[None, :, :]) ** 2, axis=-1)
    return jnp.sum(jnp.min(d2, axis=1))


if __name__ == "__main__":
    key = jax.random.PRNGKey(0)
    k_scan, k_templ = jax.random.split(key)

    # Small point clouds; shapes exercise template/scan padding and tiling.
    N, M = 700, 272
    scan = jax.random.normal(k_scan, (N, 3), dtype=jnp.float32)
    template = 0.8 * jax.random.normal(k_templ, (M, 3), dtype=jnp.float32) + 0.1

    ref = jax.block_until_ready(reference_data_loss(scan, template))

    # Default tiling (single scan tile at this size, 2 template tiles).
    loss = jax.block_until_ready(chamfer_data_loss(scan, template))
    np.testing.assert_allclose(np.asarray(loss), np.asarray(ref),
                               rtol=1e-4, atol=1e-4)

    # Small tiles: exercises multi-tile template axis and the multi-step
    # scan-axis accumulation path (3 x 3 grid).
    loss_small = jax.block_until_ready(
        chamfer_data_loss(scan, template, tm=128, tn=256))
    np.testing.assert_allclose(np.asarray(loss_small), np.asarray(ref),
                               rtol=1e-4, atol=1e-4)

    print("KERNEL_OK")
</pallas_src>

<mosaic_0001>
module attributes {stable_mosaic.version = 11 : i64} {
  func.func @_chamfer_kernel(%arg0: i32, %arg1: i32, %arg2: memref<256x3xf32, #tpu.memory_space<vmem>>, %arg3: memref<6x3x128xf32, #tpu.memory_space<vmem>>, %arg4: memref<256x128xf32, #tpu.memory_space<vmem>>) attributes {dimension_semantics = [#tpu.dimension_semantics<parallel>, #tpu.dimension_semantics<arbitrary>], iteration_bounds = array<i64: 2, 1>, scalar_prefetch = 0 : i64, scratch_operands = 0 : i64, tpu.core_type = #tpu.core_type<tc>, window_params = [{transform_indices = @transform_0, window_bounds = array<i64: 256, 3>}, {transform_indices = @transform_1, window_bounds = array<i64: 6, 3, 128>}, {transform_indices = @transform_2, window_bounds = array<i64: 256, 128>}]} {
    %c0_i32 = arith.constant 0 : i32
    %0 = arith.cmpi eq, %arg1, %c0_i32 : i32
    %1 = arith.extui %0 : i1 to i32
    %c0_i32_0 = arith.constant 0 : i32
    %2 = arith.cmpi ne, %1, %c0_i32_0 : i32
    scf.if %2 {
      %cst_19 = arith.constant 0x7F800000 : f32
      %125 = vector.broadcast %cst_19 : f32 to vector<256x128xf32>
      %c0_20 = arith.constant 0 : index
      %c0_21 = arith.constant 0 : index
      %126 = vector.load %arg4[%c0_20, %c0_21] : memref<256x128xf32, #tpu.memory_space<vmem>>, vector<256x128xf32>
      tpu.vector_store %arg4[%c0_20, %c0_21], %125 {strides = array<i32>} : memref<256x128xf32, #tpu.memory_space<vmem>>, vector<256x128xf32>,
    } else {
    }
    %c0 = arith.constant 0 : index
    %c0_1 = arith.constant 0 : index
    %3 = vector.load %arg2[%c0, %c0_1] : memref<256x3xf32, #tpu.memory_space<vmem>>, vector<256x3xf32>
    %4 = vector.extract_strided_slice %3 {offsets = [0, 0], sizes = [256, 1], strides = [1, 1]} : vector<256x3xf32> to vector<256x1xf32>
    %5 = vector.shape_cast %4 : vector<256x1xf32> to vector<256x1xf32>
    %6 = vector.broadcast %5 : vector<256x1xf32> to vector<256x128xf32>
    %7 = vector.extract_strided_slice %3 {offsets = [0, 1], sizes = [256, 1], strides = [1, 1]} : vector<256x3xf32> to vector<256x1xf32>
    %8 = vector.shape_cast %7 : vector<256x1xf32> to vector<256x1xf32>
    %9 = vector.broadcast %8 : vector<256x1xf32> to vector<256x128xf32>
    %10 = vector.extract_strided_slice %3 {offsets = [0, 2], sizes = [256, 1], strides = [1, 1]} : vector<256x3xf32> to vector<256x1xf32>
    %11 = vector.shape_cast %10 : vector<256x1xf32> to vector<256x1xf32>
    %12 = vector.broadcast %11 : vector<256x1xf32> to vector<256x128xf32>
    %cst = arith.constant 0x7F800000 : f32
    %13 = vector.broadcast %cst : f32 to vector<256x128xf32>
    %c0_i32_2 = arith.constant 0 : i32
    %14 = arith.index_cast %c0_i32_2 : i32 to index
    %c0_3 = arith.constant 0 : index
    %c0_4 = arith.constant 0 : index
    %15 = vector.load %arg3[%14, %c0_3, %c0_4] : memref<6x3x128xf32, #tpu.memory_space<vmem>>, vector<1x3x128xf32>
    %16 = vector.shape_cast %15 : vector<1x3x128xf32> to vector<3x128xf32>
    %17 = vector.extract_strided_slice %16 {offsets = [0, 0], sizes = [1, 128], strides = [1, 1]} : vector<3x128xf32> to vector<1x128xf32>
    %18 = vector.broadcast %17 : vector<1x128xf32> to vector<256x128xf32>
    %19 = arith.subf %6, %18 : vector<256x128xf32>
    %20 = vector.extract_strided_slice %16 {offsets = [1, 0], sizes = [1, 128], strides = [1, 1]} : vector<3x128xf32> to vector<1x128xf32>
    %21 = vector.broadcast %20 : vector<1x128xf32> to vector<256x128xf32>
    %22 = arith.subf %9, %21 : vector<256x128xf32>
    %23 = vector.extract_strided_slice %16 {offsets = [2, 0], sizes = [1, 128], strides = [1, 1]} : vector<3x128xf32> to vector<1x128xf32>
    %24 = vector.broadcast %23 : vector<1x128xf32> to vector<256x128xf32>
    %25 = arith.subf %12, %24 : vector<256x128xf32>
    %26 = arith.mulf %19, %19 : vector<256x128xf32>
    %27 = arith.mulf %22, %22 : vector<256x128xf32>
    %28 = arith.addf %26, %27 : vector<256x128xf32>
    %29 = arith.mulf %25, %25 : vector<256x128xf32>
    %30 = arith.addf %28, %29 : vector<256x128xf32>
    %31 = arith.minimumf %13, %30 : vector<256x128xf32>
    %c1_i32 = arith.constant 1 : i32
    %32 = arith.index_cast %c1_i32 : i32 to index
    %c0_5 = arith.constant 0 : index
    %c0_6 = arith.constant 0 : index
    %33 = vector.load %arg3[%32, %c0_5, %c0_6] : memref<6x3x128xf32, #tpu.memory_space<vmem>>, vector<1x3x128xf32>
    %34 = vector.shape_cast %33 : vector<1x3x128xf32> to vector<3x128xf32>
    %35 = vector.extract_strided_slice %34 {offsets = [0, 0], sizes = [1, 128], strides = [1, 1]} : vector<3x128xf32> to vector<1x128xf32>
    %36 = vector.broadcast %35 : vector<1x128xf32> to vector<256x128xf32>
    %37 = arith.subf %6, %36 : vector<256x128xf32>
    %38 = vector.extract_strided_slice %34 {offsets = [1, 0], sizes = [1, 128], strides = [1, 1]} : vector<3x128xf32> to vector<1x128xf32>
    %39 = vector.broadcast %38 : vector<1x128xf32> to vector<256x128xf32>
    %40 = arith.subf %9, %39 : vector<256x128xf32>
    %41 = vector.extract_strided_slice %34 {offsets = [2, 0], sizes = [1, 128], strides = [1, 1]} : vector<3x128xf32> to vector<1x128xf32>
    %42 = vector.broadcast %41 : vector<1x128xf32> to vector<256x128xf32>
    %43 = arith.subf %12, %42 : vector<256x128xf32>
    %44 = arith.mulf %37, %37 : vector<256x128xf32>
    %45 = arith.mulf %40, %40 : vector<256x128xf32>
    %46 = arith.addf %44, %45 : vector<256x128xf32>
    %47 = arith.mulf %43, %43 : vector<256x128xf32>
    %48 = arith.addf %46, %47 : vector<256x128xf32>
    %49 = arith.minimumf %31, %48 : vector<256x128xf32>
    %c2_i32 = arith.constant 2 : i32
    %50 = arith.index_cast %c2_i32 : i32 to index
    %c0_7 = arith.constant 0 : index
    %c0_8 = arith.constant 0 : index
    %51 = vector.load %arg3[%50, %c0_7, %c0_8] : memref<6x3x128xf32, #tpu.memory_space<vmem>>, vector<1x3x128xf32>
    %52 = vector.shape_cast %51 : vector<1x3x128xf32> to vector<3x128xf32>
    %53 = vector.extract_strided_slice %52 {offsets = [0, 0], sizes = [1, 128], strides = [1, 1]} : vector<3x128xf32> to vector<1x128xf32>
    %54 = vector.broadcast %53 : vector<1x128xf32> to vector<256x128xf32>
    %55 = arith.subf %6, %54 : vector<256x128xf32>
    %56 = vector.extract_strided_slice %52 {offsets = [1, 0], sizes = [1, 128], strides = [1, 1]} : vector<3x128xf32> to vector<1x128xf32>
    %57 = vector.broadcast %56 : vector<1x128xf32> to vector<256x128xf32>
    %58 = arith.subf %9, %57 : vector<256x128xf32>
    %59 = vector.extract_strided_slice %52 {offsets = [2, 0], sizes = [1, 128], strides = [1, 1]} : vector<3x128xf32> to vector<1x128xf32>
    %60 = vector.broadcast %59 : vector<1x128xf32> to vector<256x128xf32>
    %61 = arith.subf %12, %60 : vector<256x128xf32>
    %62 = arith.mulf %55, %55 : vector<256x128xf32>
    %63 = arith.mulf %58, %58 : vector<256x128xf32>
    %64 = arith.addf %62, %63 : vector<256x128xf32>
    %65 = arith.mulf %61, %61 : vector<256x128xf32>
    %66 = arith.addf %64, %65 : vector<256x128xf32>
    %67 = arith.minimumf %49, %66 : vector<256x128xf32>
    %c3_i32 = arith.constant 3 : i32
    %68 = arith.index_cast %c3_i32 : i32 to index
    %c0_9 = arith.constant 0 : index
    %c0_10 = arith.constant 0 : index
    %69 = vector.load %arg3[%68, %c0_9, %c0_10] : memref<6x3x128xf32, #tpu.memory_space<vmem>>, vector<1x3x128xf32>
    %70 = vector.shape_cast %69 : vector<1x3x128xf32> to vector<3x128xf32>
    %71 = vector.extract_strided_slice %70 {offsets = [0, 0], sizes = [1, 128], strides = [1, 1]} : vector<3x128xf32> to vector<1x128xf32>
    %72 = vector.broadcast %71 : vector<1x128xf32> to vector<256x128xf32>
    %73 = arith.subf %6, %72 : vector<256x128xf32>
    %74 = vector.extract_strided_slice %70 {offsets = [1, 0], sizes = [1, 128], strides = [1, 1]} : vector<3x128xf32> to vector<1x128xf32>
    %75 = vector.broadcast %74 : vector<1x128xf32> to vector<256x128xf32>
    %76 = arith.subf %9, %75 : vector<256x128xf32>
    %77 = vector.extract_strided_slice %70 {offsets = [2, 0], sizes = [1, 128], strides = [1, 1]} : vector<3x128xf32> to vector<1x128xf32>
    %78 = vector.broadcast %77 : vector<1x128xf32> to vector<256x128xf32>
    %79 = arith.subf %12, %78 : vector<256x128xf32>
    %80 = arith.mulf %73, %73 : vector<256x128xf32>
    %81 = arith.mulf %76, %76 : vector<256x128xf32>
    %82 = arith.addf %80, %81 : vector<256x128xf32>
    %83 = arith.mulf %79, %79 : vector<256x128xf32>
    %84 = arith.addf %82, %83 : vector<256x128xf32>
    %85 = arith.minimumf %67, %84 : vector<256x128xf32>
    %c4_i32 = arith.constant 4 : i32
    %86 = arith.index_cast %c4_i32 : i32 to index
    %c0_11 = arith.constant 0 : index
    %c0_12 = arith.constant 0 : index
    %87 = vector.load %arg3[%86, %c0_11, %c0_12] : memref<6x3x128xf32, #tpu.memory_space<vmem>>, vector<1x3x128xf32>
    %88 = vector.shape_cast %87 : vector<1x3x128xf32> to vector<3x128xf32>
    %89 = vector.extract_strided_slice %88 {offsets = [0, 0], sizes = [1, 128], strides = [1, 1]} : vector<3x128xf32> to vector<1x128xf32>
    %90 = vector.broadcast %89 : vector<1x128xf32> to vector<256x128xf32>
    %91 = arith.subf %6, %90 : vector<256x128xf32>
    %92 = vector.extract_strided_slice %88 {offsets = [1, 0], sizes = [1, 128], strides = [1, 1]} : vector<3x128xf32> to vector<1x128xf32>
    %93 = vector.broadcast %92 : vector<1x128xf32> to vector<256x128xf32>
    %94 = arith.subf %9, %93 : vector<256x128xf32>
    %95 = vector.extract_strided_slice %88 {offsets = [2, 0], sizes = [1, 128], strides = [1, 1]} : vector<3x128xf32> to vector<1x128xf32>
    %96 = vector.broadcast %95 : vector<1x128xf32> to vector<256x128xf32>
    %97 = arith.subf %12, %96 : vector<256x128xf32>
    %98 = arith.mulf %91, %91 : vector<256x128xf32>
    %99 = arith.mulf %94, %94 : vector<256x128xf32>
    %100 = arith.addf %98, %99 : vector<256x128xf32>
    %101 = arith.mulf %97, %97 : vector<256x128xf32>
    %102 = arith.addf %100, %101 : vector<256x128xf32>
    %103 = arith.minimumf %85, %102 : vector<256x128xf32>
    %c5_i32 = arith.constant 5 : i32
    %104 = arith.index_cast %c5_i32 : i32 to index
    %c0_13 = arith.constant 0 : index
    %c0_14 = arith.constant 0 : index
    %105 = vector.load %arg3[%104, %c0_13, %c0_14] : memref<6x3x128xf32, #tpu.memory_space<vmem>>, vector<1x3x128xf32>
    %106 = vector.shape_cast %105 : vector<1x3x128xf32> to vector<3x128xf32>
    %107 = vector.extract_strided_slice %106 {offsets = [0, 0], sizes = [1, 128], strides = [1, 1]} : vector<3x128xf32> to vector<1x128xf32>
    %108 = vector.broadcast %107 : vector<1x128xf32> to vector<256x128xf32>
    %109 = arith.subf %6, %108 : vector<256x128xf32>
    %110 = vector.extract_strided_slice %106 {offsets = [1, 0], sizes = [1, 128], strides = [1, 1]} : vector<3x128xf32> to vector<1x128xf32>
    %111 = vector.broadcast %110 : vector<1x128xf32> to vector<256x128xf32>
    %112 = arith.subf %9, %111 : vector<256x128xf32>
    %113 = vector.extract_strided_slice %106 {offsets = [2, 0], sizes = [1, 128], strides = [1, 1]} : vector<3x128xf32> to vector<1x128xf32>
    %114 = vector.broadcast %113 : vector<1x128xf32> to vector<256x128xf32>
    %115 = arith.subf %12, %114 : vector<256x128xf32>
    %116 = arith.mulf %109, %109 : vector<256x128xf32>
    %117 = arith.mulf %112, %112 : vector<256x128xf32>
    %118 = arith.addf %116, %117 : vector<256x128xf32>
    %119 = arith.mulf %115, %115 : vector<256x128xf32>
    %120 = arith.addf %118, %119 : vector<256x128xf32>
    %121 = arith.minimumf %103, %120 : vector<256x128xf32>
    %c6_i32 = arith.constant 6 : i32
    %c0_15 = arith.constant 0 : index
    %c0_16 = arith.constant 0 : index
    %122 = vector.load %arg4[%c0_15, %c0_16] : memref<256x128xf32, #tpu.memory_space<vmem>>, vector<256x128xf32>
    %123 = arith.minimumf %122, %121 : vector<256x128xf32>
    %c0_17 = arith.constant 0 : index
    %c0_18 = arith.constant 0 : index
    %124 = vector.load %arg4[%c0_17, %c0_18] : memref<256x128xf32, #tpu.memory_space<vmem>>, vector<256x128xf32>
    tpu.vector_store %arg4[%c0_17, %c0_18], %123 {strides = array<i32>} : memref<256x128xf32, #tpu.memory_space<vmem>>, vector<256x128xf32>,
    return
  }
  func.func @transform_0(%arg0: i32, %arg1: i32) -> (i32, i32) {
    %c0_i32 = arith.constant 0 : i32
    %c0_i32_0 = arith.constant 0 : i32
    return %arg0, %c0_i32 : i32, i32
  }
  func.func @transform_1(%arg0: i32, %arg1: i32) -> (i32, i32, i32) {
    %c0_i32 = arith.constant 0 : i32
    %c0_i32_0 = arith.constant 0 : i32
    %c0_i32_1 = arith.constant 0 : i32
    return %arg1, %c0_i32, %c0_i32_0 : i32, i32, i32
  }
  func.func @transform_2(%arg0: i32, %arg1: i32) -> (i32, i32) {
    %c0_i32 = arith.constant 0 : i32
    %c0_i32_0 = arith.constant 0 : i32
    return %arg0, %c0_i32 : i32, i32
  }
}

</mosaic_0001>

<llo_original>
// kernel: tpu_custom_call.1
$region0: #{tpu_custom_call.1}
  #allocation0 [shape = 'u32[]', space=smem, size = 0x4, offset = 0x4, fixed_abs, tag = 'smem constant byte address 0x4 - core index']
  #allocation1 [shape = 'u32[144,128]{1,0:T(1,128)}', space=vmem, size = 0x12000, scoped, tag = 'internal scratch']
  %s0 = inlined_call_operand.vmem [shape: f32[512,3], index: 0, kind: input, shape index: {}]
  %s1 = inlined_call_operand.vmem [shape: f32[6,3,128], index: 1, kind: input, shape index: {}]
  %s2 = inlined_call_operand.hbm [shape: f32[512,128], index: 2, kind: output, shape index: {}]
  %s3 = sld [smem:[#allocation0]]
  $region45: #{tpu_custom_call.1} parent=0
    _
  %s5 = ssub.s32 1, %s3
  %s6 = scalar_select 0, %s5, %s3
  $region1: #{tpu_custom_call.1} parent=0
    #allocation2 [shape = 'u8[262144]{0}', space=vmem, size = 0x40000, scoped, tag = 'output window, operand 0']
    #allocation3 [shape = 's32[2]{0}', space=sflag, size = 0x8, scoped, tag = 'scoped memory for tpu_custom_call.1']
    %7 = vsyncpa [#allocation3], 0
    %s8 = scalar_lea.sflag [#allocation3], 1
    %9 = vsyncpa %s8, 0
    loop: start=0, step=1, limit=4
    $region2: #{tpu_custom_call.1} parent=1 // loop_pre_header
      _
    $region3: #{tpu_custom_call.1} parent=1 // loop_header
      %s11 = sphi 0, %s15
      %p12 = scmp.ge.s32.totalorder %s11, 4
      %s18 = sphi 0, %s30
      %s19 = sphi 0, %s26
      %s20 = sphi 0, %s18
      %s21 = sphi 0, %s19
      %s22 = sphi 0, %s20
      %s23 = sphi 0, %s21
      %s33 = sphi 0, %s35
      %s36 = sphi 0, %s33
      %s37 = sphi 0, %s36
      %s53 = sphi 0, %s37
      %s59 = sphi 0, %s61
      %s62 = sphi 0, %s59
      %s63 = sphi 0, %s62
      %s79 = sphi 0, %s63
      %s85 = sphi 0, %s87
      %s88 = sphi 0, %s85
      %s89 = sphi 0, %s88
      %s105 = sphi 0, %s89
    $region4: #{tpu_custom_call.1} parent=1 // loop_header_branch
      %14 = sbr.rel (%p12) target = $region8
    $region5: #{tpu_custom_call.1} parent=1 // loop_body
      %s16 = ssub.s32 %s11, 1
      %s17 = ssub.s32 %s11, 2
      %s24 = sadd.s32 1, %s19
      %p25 = scmp.ge.s32.totalorder %s24, 1
      %s26 = scalar_select %p25, 0, %s24
      %s27 = sadd.s32 1, %s18
      %s28 = scalar_select %p25, %s27, %s18
      %p29 = scmp.ge.s32.totalorder %s28, 2
      %s30 = scalar_select %p29, 0, %s28
      %s31 = ssub.s32 %s18, %s30
      %p32 = scmp.eq.s32.totalorder %s31, 0
      %s34 = sadd.s32 %s33, 1
      %s35 = scalar_select %p32, %s33, %s34
      %p38 = pneg %p32
      %p39 = scmp.eq.s32.totalorder %s11, 1
      %p40 = por %p38, %p39
      %p41 = scmp.ne.s32.totalorder %s33, %s36
      %p42 = scmp.eq.s32.totalorder %s11, 0
      %p43 = por %p41, %p42
      %p44 = scmp.ne.s32.totalorder %s33, %s36
      %p45 = scmp.eq.s32.totalorder %s16, 1
      %p46 = por %p44, %p45
      %p47 = scmp.ne.s32.totalorder %s36, %s37
      %p48 = scmp.eq.s32.totalorder %s16, 0
      %p49 = por %p47, %p48
      %p50 = scmp.ne.s32.totalorder %s36, %s37
      %p51 = scmp.eq.s32.totalorder %s17, 1
      %p52 = por %p50, %p51
      %p54 = scmp.ne.s32.totalorder %s37, %s53
      %p55 = scmp.eq.s32.totalorder %s17, 0
      %p56 = por %p54, %p55
      %s57 = ssub.s32 %s19, %s26
      %p58 = scmp.eq.s32.totalorder %s57, 0
      %s60 = sadd.s32 %s59, 1
      %s61 = scalar_select %p58, %s59, %s60
      %p64 = pneg %p58
      %p65 = scmp.eq.s32.totalorder %s11, 1
      %p66 = por %p64, %p65
      %p67 = scmp.ne.s32.totalorder %s59, %s62
      %p68 = scmp.eq.s32.totalorder %s11, 0
      %p69 = por %p67, %p68
      %p70 = scmp.ne.s32.totalorder %s59, %s62
      %p71 = scmp.eq.s32.totalorder %s16, 1
      %p72 = por %p70, %p71
      %p73 = scmp.ne.s32.totalorder %s62, %s63
      %p74 = scmp.eq.s32.totalorder %s16, 0
      %p75 = por %p73, %p74
      %p76 = scmp.ne.s32.totalorder %s62, %s63
      %p77 = scmp.eq.s32.totalorder %s17, 1
      %p78 = por %p76, %p77
      %p80 = scmp.ne.s32.totalorder %s63, %s79
      %p81 = scmp.eq.s32.totalorder %s17, 0
      %p82 = por %p80, %p81
      %s83 = ssub.s32 %s18, %s30
      %p84 = scmp.eq.s32.totalorder %s83, 0
      %s86 = sadd.s32 %s85, 1
      %s87 = scalar_select %p84, %s85, %s86
      %p90 = pneg %p84
      %p91 = scmp.eq.s32.totalorder %s11, 1
      %p92 = por %p90, %p91
      %p93 = scmp.ne.s32.totalorder %s85, %s88
      %p94 = scmp.eq.s32.totalorder %s11, 0
      %p95 = por %p93, %p94
      %p96 = scmp.ne.s32.totalorder %s85, %s88
      %p97 = scmp.eq.s32.totalorder %s16, 1
      %p98 = por %p96, %p97
      %p99 = scmp.ne.s32.totalorder %s88, %s89
      %p100 = scmp.eq.s32.totalorder %s16, 0
      %p101 = por %p99, %p100
      %p102 = scmp.ne.s32.totalorder %s88, %s89
      %p103 = scmp.eq.s32.totalorder %s17, 1
      %p104 = por %p102, %p103
      %p106 = scmp.ne.s32.totalorder %s89, %s105
      %p107 = scmp.eq.s32.totalorder %s17, 0
      %p108 = por %p106, %p107
      %p109 = scmp.le.s32.totalorder 1, %s11
      %p110 = scmp.lt.s32.totalorder %s11, 3
      %p111 = pnand %p109, %p110
      %p112 = pneg %p111
      // Predicated region
      $region9: #{tpu_custom_call.1} parent=5 // pred_check
        _
      $region10: #{tpu_custom_call.1} parent=5 // pred_check_branch
        %114 = sbr.rel (%p111) target = $region12
      $region11: #{tpu_custom_call.1} parent=5 // pred_region
        %s115 = ssub.s32 %s11, 1
        // Predicated region
        $region13: #{tpu_custom_call.1} parent=11 // pred_check
          %p116 = pneg %p75
        $region14: #{tpu_custom_call.1} parent=11 // pred_check_branch
          %118 = sbr.rel (%p116) target = $region16
        $region15: #{tpu_custom_call.1} parent=11 // pred_region
          %s119 = smul.u32 6, %s21
          %p120 = scmp.lt.s32.totalorder %s119, 5
          %s121 = scalar_select %p120, %s119, 5
          %s122 = smul.addr %s121, 4
          %s123 = scalar_lea.vmem %s1, %s122
          %s124 = smul.u32 6, %s21
        $region16: #{tpu_custom_call.1} parent=11 // pred_fallthru
          _
      $region12: #{tpu_custom_call.1} parent=5 // pred_fallthru
        _
      %p125 = scmp.lt.s32.totalorder %s11, 2
      // Predicated region
      $region17: #{tpu_custom_call.1} parent=5 // pred_check
        %p126 = pneg %p125
      $region18: #{tpu_custom_call.1} parent=5 // pred_check_branch
        %128 = sbr.rel (%p126) target = $region20
      $region19: #{tpu_custom_call.1} parent=5 // pred_region
        // Predicated region
        $region21: #{tpu_custom_call.1} parent=19 // pred_check
          %p129 = pneg %p43
        $region22: #{tpu_custom_call.1} parent=19 // pred_check_branch
          %131 = sbr.rel (%p129) target = $region24
        $region23: #{tpu_custom_call.1} parent=19 // pred_region
          %s132 = smul.u32 32, %s18
          %p133 = scmp.lt.s32.totalorder %s132, 63
          %s134 = scalar_select %p133, %s132, 63
          %s135 = smul.addr %s134, 8
          %s136 = scalar_lea.vmem %s0, %s135
          %s137 = smul.u32 32, %s18
        $region24: #{tpu_custom_call.1} parent=19 // pred_fallthru
          _
      $region20: #{tpu_custom_call.1} parent=5 // pred_fallthru
        _
      %p138 = scmp.le.s32.totalorder 1, %s11
      %p139 = scmp.lt.s32.totalorder %s11, 3
      %p140 = pnand %p138, %p139
      %p141 = pneg %p140
      // Predicated region
      $region25: #{tpu_custom_call.1} parent=5 // pred_check
        _
      $region26: #{tpu_custom_call.1} parent=5 // pred_check_branch
        %143 = sbr.rel (%p140) target = $region28
      $region27: #{tpu_custom_call.1} parent=5 // pred_region
        %s144 = ssub.s32 %s11, 1
        %s145 = smul.u32 32, %s20
        %p146 = scmp.lt.s32.totalorder %s145, 63
        %s147 = scalar_select %p146, %s145, 63
        %s148 = smul.addr %s147, 8
        %s149 = scalar_lea.vmem %s0, %s148
        %p150 = pneg %p49
        %p151 = pneg %p46
        %s152 = smul.u32 6, %s21
        %p153 = scmp.lt.s32.totalorder %s152, 5
        %s154 = scalar_select %p153, %s152, 5
        %s155 = smul.addr %s154, 4
        %s156 = scalar_lea.vmem %s1, %s155
        %p157 = pneg %p75
        %p158 = pneg %p72
        %p159 = pneg %p101
        %p160 = pneg %p98
        %s161 = sand.u32 %s88, 1
        %s162 = scalar_lea.sflag [#allocation3], %s161
        %s163 = sand.u32 %s88, 1
        %s164 = smul.addr %s163, 256
        %s165 = scalar_lea.vmem [#allocation2], %s164
        %s166 = smul.u32 32, %s20
        %p167 = scmp.lt.s32.totalorder %s166, 63
        %s168 = scalar_select %p167, %s166, 63
        %s169 = smul.addr %s168, 8
        %s170 = scalar_lea.vmem %s0, %s169
        %s171 = smul.u32 32, %s20
        %s172 = smul.u32 6, %s21
        %p173 = scmp.lt.s32.totalorder %s172, 5
        %s174 = scalar_select %p173, %s172, 5
        %s175 = smul.addr %s174, 4
        %s176 = scalar_lea.vmem %s1, %s175
        %s177 = smul.u32 6, %s21
        %s178 = smul.u32 32, %s20
        %p179 = scmp.eq.s32.totalorder %s21, 0
        // Predicated region
        $region29: #{tpu_custom_call.1} parent=27 // pred_check
          %p180 = pneg %p179
        $region30: #{tpu_custom_call.1} parent=27 // pred_check_branch
          %182 = sbr.rel (%p180) target = $region32
        $region31: #{tpu_custom_call.1} parent=27 // pred_region
          %183 = vst [vmem:[%s165] sm:$0xff] inf
          %184 = vst [vmem:[%s165 + $0x8] sm:$0xff] inf
          %185 = vst [vmem:[%s165 + $0x10] sm:$0xff] inf
          %186 = vst [vmem:[%s165 + $0x18] sm:$0xff] inf
          %187 = vst [vmem:[%s165 + $0x20] sm:$0xff] inf
          %188 = vst [vmem:[%s165 + $0x28] sm:$0xff] inf
          %189 = vst [vmem:[%s165 + $0x30] sm:$0xff] inf
          %190 = vst [vmem:[%s165 + $0x38] sm:$0xff] inf
          %191 = vst [vmem:[%s165 + $0x40] sm:$0xff] inf
          %192 = vst [vmem:[%s165 + $0x48] sm:$0xff] inf
          %193 = vst [vmem:[%s165 + $0x50] sm:$0xff] inf
          %194 = vst [vmem:[%s165 + $0x58] sm:$0xff] inf
          %195 = vst [vmem:[%s165 + $0x60] sm:$0xff] inf
          %196 = vst [vmem:[%s165 + $0x68] sm:$0xff] inf
          %197 = vst [vmem:[%s165 + $0x70] sm:$0xff] inf
          %198 = vst [vmem:[%s165 + $0x78] sm:$0xff] inf
          %199 = vst [vmem:[%s165 + $0x80] sm:$0xff] inf
          %200 = vst [vmem:[%s165 + $0x88] sm:$0xff] inf
          %201 = vst [vmem:[%s165 + $0x90] sm:$0xff] inf
          %202 = vst [vmem:[%s165 + $0x98] sm:$0xff] inf
          %203 = vst [vmem:[%s165 + $0xa0] sm:$0xff] inf
          %204 = vst [vmem:[%s165 + $0xa8] sm:$0xff] inf
          %205 = vst [vmem:[%s165 + $0xb0] sm:$0xff] inf
          %206 = vst [vmem:[%s165 + $0xb8] sm:$0xff] inf
          %207 = vst [vmem:[%s165 + $0xc0] sm:$0xff] inf
          %208 = vst [vmem:[%s165 + $0xc8] sm:$0xff] inf
          %209 = vst [vmem:[%s165 + $0xd0] sm:$0xff] inf
          %210 = vst [vmem:[%s165 + $0xd8] sm:$0xff] inf
          %211 = vst [vmem:[%s165 + $0xe0] sm:$0xff] inf
          %212 = vst [vmem:[%s165 + $0xe8] sm:$0xff] inf
          %213 = vst [vmem:[%s165 + $0xf0] sm:$0xff] inf
          %214 = vst [vmem:[%s165 + $0xf8] sm:$0xff] inf
        $region32: #{tpu_custom_call.1} parent=27 // pred_fallthru
          _
        %v215 = vld [vmem:[%s170] sm:$0xff]
        %v216 = vld [vmem:[%s170 + $0x8] sm:$0xff]
        %v217 = vld [vmem:[%s170 + $0x10] sm:$0xff]
        %v218 = vld [vmem:[%s170 + $0x18] sm:$0xff]
        %v219 = vld [vmem:[%s170 + $0x20] sm:$0xff]
        %v220 = vld [vmem:[%s170 + $0x28] sm:$0xff]
        %v221 = vld [vmem:[%s170 + $0x30] sm:$0xff]
        %v222 = vld [vmem:[%s170 + $0x38] sm:$0xff]
        %v223 = vld [vmem:[%s170 + $0x40] sm:$0xff]
        %v224 = vld [vmem:[%s170 + $0x48] sm:$0xff]
        %v225 = vld [vmem:[%s170 + $0x50] sm:$0xff]
        %v226 = vld [vmem:[%s170 + $0x58] sm:$0xff]
        %v227 = vld [vmem:[%s170 + $0x60] sm:$0xff]
        %v228 = vld [vmem:[%s170 + $0x68] sm:$0xff]
        %v229 = vld [vmem:[%s170 + $0x70] sm:$0xff]
        %v230 = vld [vmem:[%s170 + $0x78] sm:$0xff]
        %v231 = vld [vmem:[%s170 + $0x80] sm:$0xff]
        %v232 = vld [vmem:[%s170 + $0x88] sm:$0xff]
        %v233 = vld [vmem:[%s170 + $0x90] sm:$0xff]
        %v234 = vld [vmem:[%s170 + $0x98] sm:$0xff]
        %v235 = vld [vmem:[%s170 + $0xa0] sm:$0xff]
        %v236 = vld [vmem:[%s170 + $0xa8] sm:$0xff]
        %v237 = vld [vmem:[%s170 + $0xb0] sm:$0xff]
        %v238 = vld [vmem:[%s170 + $0xb8] sm:$0xff]
        %v239 = vld [vmem:[%s170 + $0xc0] sm:$0xff]
        %v240 = vld [vmem:[%s170 + $0xc8] sm:$0xff]
        %v241 = vld [vmem:[%s170 + $0xd0] sm:$0xff]
        %v242 = vld [vmem:[%s170 + $0xd8] sm:$0xff]
        %v243 = vld [vmem:[%s170 + $0xe0] sm:$0xff]
        %v244 = vld [vmem:[%s170 + $0xe8] sm:$0xff]
        %v245 = vld [vmem:[%s170 + $0xf0] sm:$0xff]
        %v246 = vld [vmem:[%s170 + $0xf8] sm:$0xff]
        %248 = vset.pattern.permute.xlu0 0
        %249 = vperm.xlu0 %248, %v215
        %v250 = vpop.permute.xlu0 %249
        %253 = vset.pattern.permute.xlu0 0
        %254 = vperm.xlu0 %253, %v216
        %v255 = vpop.permute.xlu0 %254
        %258 = vset.pattern.permute.xlu0 0
        %259 = vperm.xlu0 %258, %v217
        %v260 = vpop.permute.xlu0 %259
        %263 = vset.pattern.permute.xlu0 0
        %264 = vperm.xlu0 %263, %v218
        %v265 = vpop.permute.xlu0 %264
        %268 = vset.pattern.permute.xlu0 0
        %269 = vperm.xlu0 %268, %v219
        %v270 = vpop.permute.xlu0 %269
        %273 = vset.pattern.permute.xlu0 0
        %274 = vperm.xlu0 %273, %v220
        %v275 = vpop.permute.xlu0 %274
        %278 = vset.pattern.permute.xlu0 0
        %279 = vperm.xlu0 %278, %v221
        %v280 = vpop.permute.xlu0 %279
        %283 = vset.pattern.permute.xlu0 0
        %284 = vperm.xlu0 %283, %v222
        %v285 = vpop.permute.xlu0 %284
        %288 = vset.pattern.permute.xlu0 0
        %289 = vperm.xlu0 %288, %v223
        %v290 = vpop.permute.xlu0 %289
        %293 = vset.pattern.permute.xlu0 0
        %294 = vperm.xlu0 %293, %v224
        %v295 = vpop.permute.xlu0 %294
        %298 = vset.pattern.permute.xlu0 0
        %299 = vperm.xlu0 %298, %v225
        %v300 = vpop.permute.xlu0 %299
        %303 = vset.pattern.permute.xlu0 0
        %304 = vperm.xlu0 %303, %v226
        %v305 = vpop.permute.xlu0 %304
        %308 = vset.pattern.permute.xlu0 0
        %309 = vperm.xlu0 %308, %v227
        %v310 = vpop.permute.xlu0 %309
        %313 = vset.pattern.permute.xlu0 0
        %314 = vperm.xlu0 %313, %v228
        %v315 = vpop.permute.xlu0 %314
        %318 = vset.pattern.permute.xlu0 0
        %319 = vperm.xlu0 %318, %v229
        %v320 = vpop.permute.xlu0 %319
        %323 = vset.pattern.permute.xlu0 0
        %324 = vperm.xlu0 %323, %v230
        %v325 = vpop.permute.xlu0 %324
        %328 = vset.pattern.permute.xlu0 0
        %329 = vperm.xlu0 %328, %v231
        %v330 = vpop.permute.xlu0 %329
        %333 = vset.pattern.permute.xlu0 0
        %334 = vperm.xlu0 %333, %v232
        %v335 = vpop.permute.xlu0 %334
        %338 = vset.pattern.permute.xlu0 0
        %339 = vperm.xlu0 %338, %v233
        %v340 = vpop.permute.xlu0 %339
        %343 = vset.pattern.permute.xlu0 0
        %344 = vperm.xlu0 %343, %v234
        %v345 = vpop.permute.xlu0 %344
        %348 = vset.pattern.permute.xlu0 0
        %349 = vperm.xlu0 %348, %v235
        %v350 = vpop.permute.xlu0 %349
        %353 = vset.pattern.permute.xlu0 0
        %354 = vperm.xlu0 %353, %v236
        %v355 = vpop.permute.xlu0 %354
        %358 = vset.pattern.permute.xlu0 0
        %359 = vperm.xlu0 %358, %v237
        %v360 = vpop.permute.xlu0 %359
        %363 = vset.pattern.permute.xlu0 0
        %364 = vperm.xlu0 %363, %v238
        %v365 = vpop.permute.xlu0 %364
        %368 = vset.pattern.permute.xlu0 0
        %369 = vperm.xlu0 %368, %v239
        %v370 = vpop.permute.xlu0 %369
        %373 = vset.pattern.permute.xlu0 0
        %374 = vperm.xlu0 %373, %v240
        %v375 = vpop.permute.xlu0 %374
        %378 = vset.pattern.permute.xlu0 0
        %379 = vperm.xlu0 %378, %v241
        %v380 = vpop.permute.xlu0 %379
        %383 = vset.pattern.permute.xlu0 0
        %384 = vperm.xlu0 %383, %v242
        %v385 = vpop.permute.xlu0 %384
        %388 = vset.pattern.permute.xlu0 0
        %389 = vperm.xlu0 %388, %v243
        %v390 = vpop.permute.xlu0 %389
        %393 = vset.pattern.permute.xlu0 0
        %394 = vperm.xlu0 %393, %v244
        %v395 = vpop.permute.xlu0 %394
        %398 = vset.pattern.permute.xlu0 0
        %399 = vperm.xlu0 %398, %v245
        %v400 = vpop.permute.xlu0 %399
        %403 = vset.pattern.permute.xlu0 0
        %404 = vperm.xlu0 %403, %v246
        %v405 = vpop.permute.xlu0 %404
        %407 = vset.pattern.permute.xlu0 1
        %408 = vperm.xlu0 %407, %v215
        %v409 = vpop.permute.xlu0 %408
        %411 = vset.pattern.permute.xlu0 1
        %412 = vperm.xlu0 %411, %v216
        %v413 = vpop.permute.xlu0 %412
        %415 = vset.pattern.permute.xlu0 1
        %416 = vperm.xlu0 %415, %v217
        %v417 = vpop.permute.xlu0 %416
        %419 = vset.pattern.permute.xlu0 1
        %420 = vperm.xlu0 %419, %v218
        %v421 = vpop.permute.xlu0 %420
        %423 = vset.pattern.permute.xlu0 1
        %424 = vperm.xlu0 %423, %v219
        %v425 = vpop.permute.xlu0 %424
        %427 = vset.pattern.permute.xlu0 1
        %428 = vperm.xlu0 %427, %v220
        %v429 = vpop.permute.xlu0 %428
        %431 = vset.pattern.permute.xlu0 1
        %432 = vperm.xlu0 %431, %v221
        %v433 = vpop.permute.xlu0 %432
        %435 = vset.pattern.permute.xlu0 1
        %436 = vperm.xlu0 %435, %v222
        %v437 = vpop.permute.xlu0 %436
        %439 = vset.pattern.permute.xlu0 1
        %440 = vperm.xlu0 %439, %v223
        %v441 = vpop.permute.xlu0 %440
        %443 = vset.pattern.permute.xlu0 1
        %444 = vperm.xlu0 %443, %v224
        %v445 = vpop.permute.xlu0 %444
        %447 = vset.pattern.permute.xlu0 1
        %448 = vperm.xlu0 %447, %v225
        %v449 = vpop.permute.xlu0 %448
        %451 = vset.pattern.permute.xlu0 1
        %452 = vperm.xlu0 %451, %v226
        %v453 = vpop.permute.xlu0 %452
        %455 = vset.pattern.permute.xlu0 1
        %456 = vperm.xlu0 %455, %v227
        %v457 = vpop.permute.xlu0 %456
        %459 = vset.pattern.permute.xlu0 1
        %460 = vperm.xlu0 %459, %v228
        %v461 = vpop.permute.xlu0 %460
        %463 = vset.pattern.permute.xlu0 1
        %464 = vperm.xlu0 %463, %v229
        %v465 = vpop.permute.xlu0 %464
        %467 = vset.pattern.permute.xlu0 1
        %468 = vperm.xlu0 %467, %v230
        %v469 = vpop.permute.xlu0 %468
        %471 = vset.pattern.permute.xlu0 1
        %472 = vperm.xlu0 %471, %v231
        %v473 = vpop.permute.xlu0 %472
        %475 = vset.pattern.permute.xlu0 1
        %476 = vperm.xlu0 %475, %v232
        %v477 = vpop.permute.xlu0 %476
        %479 = vset.pattern.permute.xlu0 1
        %480 = vperm.xlu0 %479, %v233
        %v481 = vpop.permute.xlu0 %480
        %483 = vset.pattern.permute.xlu0 1
        %484 = vperm.xlu0 %483, %v234
        %v485 = vpop.permute.xlu0 %484
        %487 = vset.pattern.permute.xlu0 1
        %488 = vperm.xlu0 %487, %v235
        %v489 = vpop.permute.xlu0 %488
        %491 = vset.pattern.permute.xlu0 1
        %492 = vperm.xlu0 %491, %v236
        %v493 = vpop.permute.xlu0 %492
        %495 = vset.pattern.permute.xlu0 1
        %496 = vperm.xlu0 %495, %v237
        %v497 = vpop.permute.xlu0 %496
        %499 = vset.pattern.permute.xlu0 1
        %500 = vperm.xlu0 %499, %v238
        %v501 = vpop.permute.xlu0 %500
        %503 = vset.pattern.permute.xlu0 1
        %504 = vperm.xlu0 %503, %v239
        %v505 = vpop.permute.xlu0 %504
        %507 = vset.pattern.permute.xlu0 1
        %508 = vperm.xlu0 %507, %v240
        %v509 = vpop.permute.xlu0 %508
        %511 = vset.pattern.permute.xlu0 1
        %512 = vperm.xlu0 %511, %v241
        %v513 = vpop.permute.xlu0 %512
        %515 = vset.pattern.permute.xlu0 1
        %516 = vperm.xlu0 %515, %v242
        %v517 = vpop.permute.xlu0 %516
        %519 = vset.pattern.permute.xlu0 1
        %520 = vperm.xlu0 %519, %v243
        %v521 = vpop.permute.xlu0 %520
        %523 = vset.pattern.permute.xlu0 1
        %524 = vperm.xlu0 %523, %v244
        %v525 = vpop.permute.xlu0 %524
        %527 = vset.pattern.permute.xlu0 1
        %528 = vperm.xlu0 %527, %v245
        %v529 = vpop.permute.xlu0 %528
        %531 = vset.pattern.permute.xlu0 1
        %532 = vperm.xlu0 %531, %v246
        %v533 = vpop.permute.xlu0 %532
        %535 = vset.pattern.permute.xlu0 2
        %536 = vperm.xlu0 %535, %v215
        %v537 = vpop.permute.xlu0 %536
        %539 = vset.pattern.permute.xlu0 2
        %540 = vperm.xlu0 %539, %v216
        %v541 = vpop.permute.xlu0 %540
        %543 = vset.pattern.permute.xlu0 2
        %544 = vperm.xlu0 %543, %v217
        %v545 = vpop.permute.xlu0 %544
        %547 = vset.pattern.permute.xlu0 2
        %548 = vperm.xlu0 %547, %v218
        %v549 = vpop.permute.xlu0 %548
        %551 = vset.pattern.permute.xlu0 2
        %552 = vperm.xlu0 %551, %v219
        %v553 = vpop.permute.xlu0 %552
        %555 = vset.pattern.permute.xlu0 2
        %556 = vperm.xlu0 %555, %v220
        %v557 = vpop.permute.xlu0 %556
        %559 = vset.pattern.permute.xlu0 2
        %560 = vperm.xlu0 %559, %v221
        %v561 = vpop.permute.xlu0 %560
        %563 = vset.pattern.permute.xlu0 2
        %564 = vperm.xlu0 %563, %v222
        %v565 = vpop.permute.xlu0 %564
        %567 = vset.pattern.permute.xlu0 2
        %568 = vperm.xlu0 %567, %v223
        %v569 = vpop.permute.xlu0 %568
        %571 = vset.pattern.permute.xlu0 2
        %572 = vperm.xlu0 %571, %v224
        %v573 = vpop.permute.xlu0 %572
        %575 = vset.pattern.permute.xlu0 2
        %576 = vperm.xlu0 %575, %v225
        %v577 = vpop.permute.xlu0 %576
        %579 = vset.pattern.permute.xlu0 2
        %580 = vperm.xlu0 %579, %v226
        %v581 = vpop.permute.xlu0 %580
        %583 = vset.pattern.permute.xlu0 2
        %584 = vperm.xlu0 %583, %v227
        %v585 = vpop.permute.xlu0 %584
        %587 = vset.pattern.permute.xlu0 2
        %588 = vperm.xlu0 %587, %v228
        %v589 = vpop.permute.xlu0 %588
        %591 = vset.pattern.permute.xlu0 2
        %592 = vperm.xlu0 %591, %v229
        %v593 = vpop.permute.xlu0 %592
        %595 = vset.pattern.permute.xlu0 2
        %596 = vperm.xlu0 %595, %v230
        %v597 = vpop.permute.xlu0 %596
        %599 = vset.pattern.permute.xlu0 2
        %600 = vperm.xlu0 %599, %v231
        %v601 = vpop.permute.xlu0 %600
        %603 = vset.pattern.permute.xlu0 2
        %604 = vperm.xlu0 %603, %v232
        %v605 = vpop.permute.xlu0 %604
        %607 = vset.pattern.permute.xlu0 2
        %608 = vperm.xlu0 %607, %v233
        %v609 = vpop.permute.xlu0 %608
        %611 = vset.pattern.permute.xlu0 2
        %612 = vperm.xlu0 %611, %v234
        %v613 = vpop.permute.xlu0 %612
        %615 = vset.pattern.permute.xlu0 2
        %616 = vperm.xlu0 %615, %v235
        %v617 = vpop.permute.xlu0 %616
        %619 = vset.pattern.permute.xlu0 2
        %620 = vperm.xlu0 %619, %v236
        %v621 = vpop.permute.xlu0 %620
        %623 = vset.pattern.permute.xlu0 2
        %624 = vperm.xlu0 %623, %v237
        %v625 = vpop.permute.xlu0 %624
        %627 = vset.pattern.permute.xlu0 2
        %628 = vperm.xlu0 %627, %v238
        %v629 = vpop.permute.xlu0 %628
        %631 = vset.pattern.permute.xlu0 2
        %632 = vperm.xlu0 %631, %v239
        %v633 = vpop.permute.xlu0 %632
        %635 = vset.pattern.permute.xlu0 2
        %636 = vperm.xlu0 %635, %v240
        %v637 = vpop.permute.xlu0 %636
        %639 = vset.pattern.permute.xlu0 2
        %640 = vperm.xlu0 %639, %v241
        %v641 = vpop.permute.xlu0 %640
        %643 = vset.pattern.permute.xlu0 2
        %644 = vperm.xlu0 %643, %v242
        %v645 = vpop.permute.xlu0 %644
        %647 = vset.pattern.permute.xlu0 2
        %648 = vperm.xlu0 %647, %v243
        %v649 = vpop.permute.xlu0 %648
        %651 = vset.pattern.permute.xlu0 2
        %652 = vperm.xlu0 %651, %v244
        %v653 = vpop.permute.xlu0 %652
        %655 = vset.pattern.permute.xlu0 2
        %656 = vperm.xlu0 %655, %v245
        %v657 = vpop.permute.xlu0 %656
        %659 = vset.pattern.permute.xlu0 2
        %660 = vperm.xlu0 %659, %v246
        %v661 = vpop.permute.xlu0 %660
        %v663 = vld [vmem:[%s176] sm:$0x7]
        %v664 = vlaneseq
        %v665 = vshrl.u32 %v664, 7
        %v666 = vsub.s32 0, %v665
        %v667 = vrot.slane %v663, %v666
        %v668 = vsub.f32 %v250, %v667
        %v669 = vsub.f32 %v255, %v667
        %v670 = vsub.f32 %v260, %v667
        %v671 = vsub.f32 %v265, %v667
        %v672 = vsub.f32 %v270, %v667
        %v673 = vsub.f32 %v275, %v667
        %v674 = vsub.f32 %v280, %v667
        %v675 = vsub.f32 %v285, %v667
        %v676 = vsub.f32 %v290, %v667
        %v677 = vsub.f32 %v295, %v667
        %v678 = vsub.f32 %v300, %v667
        %v679 = vsub.f32 %v305, %v667
        %v680 = vsub.f32 %v310, %v667
        %v681 = vsub.f32 %v315, %v667
        %v682 = vsub.f32 %v320, %v667
        %v683 = vsub.f32 %v325, %v667
        %v684 = vsub.f32 %v330, %v667
        %v685 = vsub.f32 %v335, %v667
        %v686 = vsub.f32 %v340, %v667
        %v687 = vsub.f32 %v345, %v667
        %v688 = vsub.f32 %v350, %v667
        %v689 = vsub.f32 %v355, %v667
        %v690 = vsub.f32 %v360, %v667
        %v691 = vsub.f32 %v365, %v667
        %v692 = vsub.f32 %v370, %v667
        %v693 = vsub.f32 %v375, %v667
        %v694 = vsub.f32 %v380, %v667
        %v695 = vsub.f32 %v385, %v667
        %v696 = vsub.f32 %v390, %v667
        %v697 = vsub.f32 %v395, %v667
        %v698 = vsub.f32 %v400, %v667
        %v699 = vsub.f32 %v405, %v667
        %v700 = vlaneseq
        %v701 = vshrl.u32 %v700, 7
        %v702 = vsub.s32 1, %v701
        %v703 = vrot.slane %v663, %v702
        %v704 = vsub.f32 %v409, %v703
        %v705 = vsub.f32 %v413, %v703
        %v706 = vsub.f32 %v417, %v703
        %v707 = vsub.f32 %v421, %v703
        %v708 = vsub.f32 %v425, %v703
        %v709 = vsub.f32 %v429, %v703
        %v710 = vsub.f32 %v433, %v703
        %v711 = vsub.f32 %v437, %v703
        %v712 = vsub.f32 %v441, %v703
        %v713 = vsub.f32 %v445, %v703
        %v714 = vsub.f32 %v449, %v703
        %v715 = vsub.f32 %v453, %v703
        %v716 = vsub.f32 %v457, %v703
        %v717 = vsub.f32 %v461, %v703
        %v718 = vsub.f32 %v465, %v703
        %v719 = vsub.f32 %v469, %v703
        %v720 = vsub.f32 %v473, %v703
        %v721 = vsub.f32 %v477, %v703
        %v722 = vsub.f32 %v481, %v703
        %v723 = vsub.f32 %v485, %v703
        %v724 = vsub.f32 %v489, %v703
        %v725 = vsub.f32 %v493, %v703
        %v726 = vsub.f32 %v497, %v703
        %v727 = vsub.f32 %v501, %v703
        %v728 = vsub.f32 %v505, %v703
        %v729 = vsub.f32 %v509, %v703
        %v730 = vsub.f32 %v513, %v703
        %v731 = vsub.f32 %v517, %v703
        %v732 = vsub.f32 %v521, %v703
        %v733 = vsub.f32 %v525, %v703
        %v734 = vsub.f32 %v529, %v703
        %v735 = vsub.f32 %v533, %v703
        %v736 = vlaneseq
        %v737 = vshrl.u32 %v736, 7
        %v738 = vsub.s32 2, %v737
        %v739 = vrot.slane %v663, %v738
        %v740 = vsub.f32 %v537, %v739
        %v741 = vsub.f32 %v541, %v739
        %v742 = vsub.f32 %v545, %v739
        %v743 = vsub.f32 %v549, %v739
        %v744 = vsub.f32 %v553, %v739
        %v745 = vsub.f32 %v557, %v739
        %v746 = vsub.f32 %v561, %v739
        %v747 = vsub.f32 %v565, %v739
        %v748 = vsub.f32 %v569, %v739
        %v749 = vsub.f32 %v573, %v739
        %v750 = vsub.f32 %v577, %v739
        %v751 = vsub.f32 %v581, %v739
        %v752 = vsub.f32 %v585, %v739
        %v753 = vsub.f32 %v589, %v739
        %v754 = vsub.f32 %v593, %v739
        %v755 = vsub.f32 %v597, %v739
        %v756 = vsub.f32 %v601, %v739
        %v757 = vsub.f32 %v605, %v739
        %v758 = vsub.f32 %v609, %v739
        %v759 = vsub.f32 %v613, %v739
        %v760 = vsub.f32 %v617, %v739
        %v761 = vsub.f32 %v621, %v739
        %v762 = vsub.f32 %v625, %v739
        %v763 = vsub.f32 %v629, %v739
        %v764 = vsub.f32 %v633, %v739
        %v765 = vsub.f32 %v637, %v739
        %v766 = vsub.f32 %v641, %v739
        %v767 = vsub.f32 %v645, %v739
        %v768 = vsub.f32 %v649, %v739
        %v769 = vsub.f32 %v653, %v739
        %v770 = vsub.f32 %v657, %v739
        %v771 = vsub.f32 %v661, %v739
        %v772 = vmul.f32 %v668, %v668
        %v773 = vmul.f32 %v669, %v669
        %v774 = vmul.f32 %v670, %v670
        %v775 = vmul.f32 %v671, %v671
        %v776 = vmul.f32 %v672, %v672
        %v777 = vmul.f32 %v673, %v673
        %v778 = vmul.f32 %v674, %v674
        %v779 = vmul.f32 %v675, %v675
        %v780 = vmul.f32 %v676, %v676
        %v781 = vmul.f32 %v677, %v677
        %v782 = vmul.f32 %v678, %v678
        %v783 = vmul.f32 %v679, %v679
        %v784 = vmul.f32 %v680, %v680
        %v785 = vmul.f32 %v681, %v681
        %v786 = vmul.f32 %v682, %v682
        %v787 = vmul.f32 %v683, %v683
        %v788 = vmul.f32 %v684, %v684
        %v789 = vmul.f32 %v685, %v685
        %v790 = vmul.f32 %v686, %v686
        %v791 = vmul.f32 %v687, %v687
        %v792 = vmul.f32 %v688, %v688
        %v793 = vmul.f32 %v689, %v689
        %v794 = vmul.f32 %v690, %v690
        %v795 = vmul.f32 %v691, %v691
        %v796 = vmul.f32 %v692, %v692
        %v797 = vmul.f32 %v693, %v693
        %v798 = vmul.f32 %v694, %v694
        %v799 = vmul.f32 %v695, %v695
        %v800 = vmul.f32 %v696, %v696
        %v801 = vmul.f32 %v697, %v697
        %v802 = vmul.f32 %v698, %v698
        %v803 = vmul.f32 %v699, %v699
        %v804 = vmul.f32 %v704, %v704
        %v805 = vmul.f32 %v705, %v705
        %v806 = vmul.f32 %v706, %v706
        %v807 = vmul.f32 %v707, %v707
        %v808 = vmul.f32 %v708, %v708
        %v809 = vmul.f32 %v709, %v709
        %v810 = vmul.f32 %v710, %v710
        %v811 = vmul.f32 %v711, %v711
        %v812 = vmul.f32 %v712, %v712
        %v813 = vmul.f32 %v713, %v713
        %v814 = vmul.f32 %v714, %v714
        %v815 = vmul.f32 %v715, %v715
        %v816 = vmul.f32 %v716, %v716
        %v817 = vmul.f32 %v717, %v717
        %v818 = vmul.f32 %v718, %v718
        %v819 = vmul.f32 %v719, %v719
        %v820 = vmul.f32 %v720, %v720
        %v821 = vmul.f32 %v721, %v721
        %v822 = vmul.f32 %v722, %v722
        %v823 = vmul.f32 %v723, %v723
        %v824 = vmul.f32 %v724, %v724
        %v825 = vmul.f32 %v725, %v725
        %v826 = vmul.f32 %v726, %v726
        %v827 = vmul.f32 %v727, %v727
        %v828 = vmul.f32 %v728, %v728
        %v829 = vmul.f32 %v729, %v729
        %v830 = vmul.f32 %v730, %v730
        %v831 = vmul.f32 %v731, %v731
        %v832 = vmul.f32 %v732, %v732
        %v833 = vmul.f32 %v733, %v733
        %v834 = vmul.f32 %v734, %v734
        %v835 = vmul.f32 %v735, %v735
        %v836 = vadd.f32 %v772, %v804
        %v837 = vadd.f32 %v773, %v805
        %v838 = vadd.f32 %v774, %v806
        %v839 = vadd.f32 %v775, %v807
        %v840 = vadd.f32 %v776, %v808
        %v841 = vadd.f32 %v777, %v809
        %v842 = vadd.f32 %v778, %v810
        %v843 = vadd.f32 %v779, %v811
        %v844 = vadd.f32 %v780, %v812
        %v845 = vadd.f32 %v781, %v813
        %v846 = vadd.f32 %v782, %v814
        %v847 = vadd.f32 %v783, %v815
        %v848 = vadd.f32 %v784, %v816
        %v849 = vadd.f32 %v785, %v817
        %v850 = vadd.f32 %v786, %v818
        %v851 = vadd.f32 %v787, %v819
        %v852 = vadd.f32 %v788, %v820
        %v853 = vadd.f32 %v789, %v821
        %v854 = vadd.f32 %v790, %v822
        %v855 = vadd.f32 %v791, %v823
        %v856 = vadd.f32 %v792, %v824
        %v857 = vadd.f32 %v793, %v825
        %v858 = vadd.f32 %v794, %v826
        %v859 = vadd.f32 %v795, %v827
        %v860 = vadd.f32 %v796, %v828
        %v861 = vadd.f32 %v797, %v829
        %v862 = vadd.f32 %v798, %v830
        %v863 = vadd.f32 %v799, %v831
        %v864 = vadd.f32 %v800, %v832
        %v865 = vadd.f32 %v801, %v833
        %v866 = vadd.f32 %v802, %v834
        %v867 = vadd.f32 %v803, %v835
        %v868 = vmul.f32 %v740, %v740
        %v869 = vmul.f32 %v741, %v741
        %v870 = vmul.f32 %v742, %v742
        %v871 = vmul.f32 %v743, %v743
        %v872 = vmul.f32 %v744, %v744
        %v873 = vmul.f32 %v745, %v745
        %v874 = vmul.f32 %v746, %v746
        %v875 = vmul.f32 %v747, %v747
        %v876 = vmul.f32 %v748, %v748
        %v877 = vmul.f32 %v749, %v749
        %v878 = vmul.f32 %v750, %v750
        %v879 = vmul.f32 %v751, %v751
        %v880 = vmul.f32 %v752, %v752
        %v881 = vmul.f32 %v753, %v753
        %v882 = vmul.f32 %v754, %v754
        %v883 = vmul.f32 %v755, %v755
        %v884 = vmul.f32 %v756, %v756
        %v885 = vmul.f32 %v757, %v757
        %v886 = vmul.f32 %v758, %v758
        %v887 = vmul.f32 %v759, %v759
        %v888 = vmul.f32 %v760, %v760
        %v889 = vmul.f32 %v761, %v761
        %v890 = vmul.f32 %v762, %v762
        %v891 = vmul.f32 %v763, %v763
        %v892 = vmul.f32 %v764, %v764
        %v893 = vmul.f32 %v765, %v765
        %v894 = vmul.f32 %v766, %v766
        %v895 = vmul.f32 %v767, %v767
        %v896 = vmul.f32 %v768, %v768
        %v897 = vmul.f32 %v769, %v769
        %v898 = vmul.f32 %v770, %v770
        %v899 = vmul.f32 %v771, %v771
        %v900 = vadd.f32 %v836, %v868
        %v901 = vadd.f32 %v837, %v869
        %v902 = vadd.f32 %v838, %v870
        %v903 = vadd.f32 %v839, %v871
        %v904 = vadd.f32 %v840, %v872
        %v905 = vadd.f32 %v841, %v873
        %v906 = vadd.f32 %v842, %v874
        %v907 = vadd.f32 %v843, %v875
        %v908 = vadd.f32 %v844, %v876
        %v909 = vadd.f32 %v845, %v877
        %v910 = vadd.f32 %v846, %v878
        %v911 = vadd.f32 %v847, %v879
        %v912 = vadd.f32 %v848, %v880
        %v913 = vadd.f32 %v849, %v881
        %v914 = vadd.f32 %v850, %v882
        %v915 = vadd.f32 %v851, %v883
        %v916 = vadd.f32 %v852, %v884
        %v917 = vadd.f32 %v853, %v885
        %v918 = vadd.f32 %v854, %v886
        %v919 = vadd.f32 %v855, %v887
        %v920 = vadd.f32 %v856, %v888
        %v921 = vadd.f32 %v857, %v889
        %v922 = vadd.f32 %v858, %v890
        %v923 = vadd.f32 %v859, %v891
        %v924 = vadd.f32 %v860, %v892
        %v925 = vadd.f32 %v861, %v893
        %v926 = vadd.f32 %v862, %v894
        %v927 = vadd.f32 %v863, %v895
        %v928 = vadd.f32 %v864, %v896
        %v929 = vadd.f32 %v865, %v897
        %v930 = vadd.f32 %v866, %v898
        %v931 = vadd.f32 %v867, %v899
        %s932 = scalar_lea.vmem %s176, 4
        %v933 = vld [vmem:[%s932] sm:$0x7]
        %v934 = vlaneseq
        %v935 = vshrl.u32 %v934, 7
        %v936 = vsub.s32 0, %v935
        %v937 = vrot.slane %v933, %v936
        %v938 = vsub.f32 %v250, %v937
        %v939 = vsub.f32 %v255, %v937
        %v940 = vsub.f32 %v260, %v937
        %v941 = vsub.f32 %v265, %v937
        %v942 = vsub.f32 %v270, %v937
        %v943 = vsub.f32 %v275, %v937
        %v944 = vsub.f32 %v280, %v937
        %v945 = vsub.f32 %v285, %v937
        %v946 = vsub.f32 %v290, %v937
        %v947 = vsub.f32 %v295, %v937
        %v948 = vsub.f32 %v300, %v937
        %v949 = vsub.f32 %v305, %v937
        %v950 = vsub.f32 %v310, %v937
        %v951 = vsub.f32 %v315, %v937
        %v952 = vsub.f32 %v320, %v937
        %v953 = vsub.f32 %v325, %v937
        %v954 = vsub.f32 %v330, %v937
        %v955 = vsub.f32 %v335, %v937
        %v956 = vsub.f32 %v340, %v937
        %v957 = vsub.f32 %v345, %v937
        %v958 = vsub.f32 %v350, %v937
        %v959 = vsub.f32 %v355, %v937
        %v960 = vsub.f32 %v360, %v937
        %v961 = vsub.f32 %v365, %v937
        %v962 = vsub.f32 %v370, %v937
        %v963 = vsub.f32 %v375, %v937
        %v964 = vsub.f32 %v380, %v937
        %v965 = vsub.f32 %v385, %v937
        %v966 = vsub.f32 %v390, %v937
        %v967 = vsub.f32 %v395, %v937
        %v968 = vsub.f32 %v400, %v937
        %v969 = vsub.f32 %v405, %v937
        %v970 = vlaneseq
        %v971 = vshrl.u32 %v970, 7
        %v972 = vsub.s32 1, %v971
        %v973 = vrot.slane %v933, %v972
        %v974 = vsub.f32 %v409, %v973
        %v975 = vsub.f32 %v413, %v973
        %v976 = vsub.f32 %v417, %v973
        %v977 = vsub.f32 %v421, %v973
        %v978 = vsub.f32 %v425, %v973
        %v979 = vsub.f32 %v429, %v973
        %v980 = vsub.f32 %v433, %v973
        %v981 = vsub.f32 %v437, %v973
        %v982 = vsub.f32 %v441, %v973
        %v983 = vsub.f32 %v445, %v973
        %v984 = vsub.f32 %v449, %v973
        %v985 = vsub.f32 %v453, %v973
        %v986 = vsub.f32 %v457, %v973
        %v987 = vsub.f32 %v461, %v973
        %v988 = vsub.f32 %v465, %v973
        %v989 = vsub.f32 %v469, %v973
        %v990 = vsub.f32 %v473, %v973
        %v991 = vsub.f32 %v477, %v973
        %v992 = vsub.f32 %v481, %v973
        %v993 = vsub.f32 %v485, %v973
        %v994 = vsub.f32 %v489, %v973
        %v995 = vsub.f32 %v493, %v973
        %v996 = vsub.f32 %v497, %v973
        %v997 = vsub.f32 %v501, %v973
        %v998 = vsub.f32 %v505, %v973
        %v999 = vsub.f32 %v509, %v973
        %v1000 = vsub.f32 %v513, %v973
        %v1001 = vsub.f32 %v517, %v973
        %v1002 = vsub.f32 %v521, %v973
        %v1003 = vsub.f32 %v525, %v973
        %v1004 = vsub.f32 %v529, %v973
        %v1005 = vsub.f32 %v533, %v973
        %v1006 = vlaneseq
        %v1007 = vshrl.u32 %v1006, 7
        %v1008 = vsub.s32 2, %v1007
        %v1009 = vrot.slane %v933, %v1008
        %v1010 = vsub.f32 %v537, %v1009
        %v1011 = vsub.f32 %v541, %v1009
        %v1012 = vsub.f32 %v545, %v1009
        %v1013 = vsub.f32 %v549, %v1009
        %v1014 = vsub.f32 %v553, %v1009
        %v1015 = vsub.f32 %v557, %v1009
        %v1016 = vsub.f32 %v561, %v1009
        %v1017 = vsub.f32 %v565, %v1009
        %v1018 = vsub.f32 %v569, %v1009
        %v1019 = vsub.f32 %v573, %v1009
        %v1020 = vsub.f32 %v577, %v1009
        %v1021 = vsub.f32 %v581, %v1009
        %v1022 = vsub.f32 %v585, %v1009
        %v1023 = vsub.f32 %v589, %v1009
        %v1024 = vsub.f32 %v593, %v1009
        %v1025 = vsub.f32 %v597, %v1009
        %v1026 = vsub.f32 %v601, %v1009
        %v1027 = vsub.f32 %v605, %v1009
        %v1028 = vsub.f32 %v609, %v1009
        %v1029 = vsub.f32 %v613, %v1009
        %v1030 = vsub.f32 %v617, %v1009
        %v1031 = vsub.f32 %v621, %v1009
        %v1032 = vsub.f32 %v625, %v1009
        %v1033 = vsub.f32 %v629, %v1009
        %v1034 = vsub.f32 %v633, %v1009
        %v1035 = vsub.f32 %v637, %v1009
        %v1036 = vsub.f32 %v641, %v1009
        %v1037 = vsub.f32 %v645, %v1009
        %v1038 = vsub.f32 %v649, %v1009
        %v1039 = vsub.f32 %v653, %v1009
        %v1040 = vsub.f32 %v657, %v1009
        %v1041 = vsub.f32 %v661, %v1009
        %v1042 = vmul.f32 %v938, %v938
        %v1043 = vmul.f32 %v939, %v939
        %v1044 = vmul.f32 %v940, %v940
        %v1045 = vmul.f32 %v941, %v941
        %v1046 = vmul.f32 %v942, %v942
        %v1047 = vmul.f32 %v943, %v943
        %v1048 = vmul.f32 %v944, %v944
        %v1049 = vmul.f32 %v945, %v945
        %v1050 = vmul.f32 %v946, %v946
        %v1051 = vmul.f32 %v947, %v947
        %v1052 = vmul.f32 %v948, %v948
        %v1053 = vmul.f32 %v949, %v949
        %v1054 = vmul.f32 %v950, %v950
        %v1055 = vmul.f32 %v951, %v951
        %v1056 = vmul.f32 %v952, %v952
        %v1057 = vmul.f32 %v953, %v953
        %v1058 = vmul.f32 %v954, %v954
        %v1059 = vmul.f32 %v955, %v955
        %v1060 = vmul.f32 %v956, %v956
        %v1061 = vmul.f32 %v957, %v957
        %v1062 = vmul.f32 %v958, %v958
        %v1063 = vmul.f32 %v959, %v959
        %v1064 = vmul.f32 %v960, %v960
        %v1065 = vmul.f32 %v961, %v961
        %v1066 = vmul.f32 %v962, %v962
        %v1067 = vmul.f32 %v963, %v963
        %v1068 = vmul.f32 %v964, %v964
        %v1069 = vmul.f32 %v965, %v965
        %v1070 = vmul.f32 %v966, %v966
        %v1071 = vmul.f32 %v967, %v967
        %v1072 = vmul.f32 %v968, %v968
        %v1073 = vmul.f32 %v969, %v969
        %v1074 = vmul.f32 %v974, %v974
        %v1075 = vmul.f32 %v975, %v975
        %v1076 = vmul.f32 %v976, %v976
        %v1077 = vmul.f32 %v977, %v977
        %v1078 = vmul.f32 %v978, %v978
        %v1079 = vmul.f32 %v979, %v979
        %v1080 = vmul.f32 %v980, %v980
        %v1081 = vmul.f32 %v981, %v981
        %v1082 = vmul.f32 %v982, %v982
        %v1083 = vmul.f32 %v983, %v983
        %v1084 = vmul.f32 %v984, %v984
        %v1085 = vmul.f32 %v985, %v985
        %v1086 = vmul.f32 %v986, %v986
        %v1087 = vmul.f32 %v987, %v987
        %v1088 = vmul.f32 %v988, %v988
        %v1089 = vmul.f32 %v989, %v989
        %v1090 = vmul.f32 %v990, %v990
        %v1091 = vmul.f32 %v991, %v991
        %v1092 = vmul.f32 %v992, %v992
        %v1093 = vmul.f32 %v993, %v993
        %v1094 = vmul.f32 %v994, %v994
        %v1095 = vmul.f32 %v995, %v995
        %v1096 = vmul.f32 %v996, %v996
        %v1097 = vmul.f32 %v997, %v997
        %v1098 = vmul.f32 %v998, %v998
        %v1099 = vmul.f32 %v999, %v999
        %v1100 = vmul.f32 %v1000, %v1000
        %v1101 = vmul.f32 %v1001, %v1001
        %v1102 = vmul.f32 %v1002, %v1002
        %v1103 = vmul.f32 %v1003, %v1003
        %v1104 = vmul.f32 %v1004, %v1004
        %v1105 = vmul.f32 %v1005, %v1005
        %v1106 = vadd.f32 %v1042, %v1074
        %v1107 = vadd.f32 %v1043, %v1075
        %v1108 = vadd.f32 %v1044, %v1076
        %v1109 = vadd.f32 %v1045, %v1077
        %v1110 = vadd.f32 %v1046, %v1078
        %v1111 = vadd.f32 %v1047, %v1079
        %v1112 = vadd.f32 %v1048, %v1080
        %v1113 = vadd.f32 %v1049, %v1081
        %v1114 = vadd.f32 %v1050, %v1082
        %v1115 = vadd.f32 %v1051, %v1083
        %v1116 = vadd.f32 %v1052, %v1084
        %v1117 = vadd.f32 %v1053, %v1085
        %v1118 = vadd.f32 %v1054, %v1086
        %v1119 = vadd.f32 %v1055, %v1087
        %v1120 = vadd.f32 %v1056, %v1088
        %v1121 = vadd.f32 %v1057, %v1089
        %v1122 = vadd.f32 %v1058, %v1090
        %v1123 = vadd.f32 %v1059, %v1091
        %v1124 = vadd.f32 %v1060, %v1092
        %v1125 = vadd.f32 %v1061, %v1093
        %v1126 = vadd.f32 %v1062, %v1094
        %v1127 = vadd.f32 %v1063, %v1095
        %v1128 = vadd.f32 %v1064, %v1096
        %v1129 = vadd.f32 %v1065, %v1097
        %v1130 = vadd.f32 %v1066, %v1098
        %v1131 = vadd.f32 %v1067, %v1099
        %v1132 = vadd.f32 %v1068, %v1100
        %v1133 = vadd.f32 %v1069, %v1101
        %v1134 = vadd.f32 %v1070, %v1102
        %v1135 = vadd.f32 %v1071, %v1103
        %v1136 = vadd.f32 %v1072, %v1104
        %v1137 = vadd.f32 %v1073, %v1105
        %v1138 = vmul.f32 %v1010, %v1010
        %v1139 = vmul.f32 %v1011, %v1011
        %v1140 = vmul.f32 %v1012, %v1012
        %v1141 = vmul.f32 %v1013, %v1013
        %v1142 = vmul.f32 %v1014, %v1014
        %v1143 = vmul.f32 %v1015, %v1015
        %v1144 = vmul.f32 %v1016, %v1016
        %v1145 = vmul.f32 %v1017, %v1017
        %v1146 = vmul.f32 %v1018, %v1018
        %v1147 = vmul.f32 %v1019, %v1019
        %v1148 = vmul.f32 %v1020, %v1020
        %v1149 = vmul.f32 %v1021, %v1021
        %v1150 = vmul.f32 %v1022, %v1022
        %v1151 = vmul.f32 %v1023, %v1023
        %v1152 = vmul.f32 %v1024, %v1024
        %v1153 = vmul.f32 %v1025, %v1025
        %v1154 = vmul.f32 %v1026, %v1026
        %v1155 = vmul.f32 %v1027, %v1027
        %v1156 = vmul.f32 %v1028, %v1028
        %v1157 = vmul.f32 %v1029, %v1029
        %v1158 = vmul.f32 %v1030, %v1030
        %v1159 = vmul.f32 %v1031, %v1031
        %v1160 = vmul.f32 %v1032, %v1032
        %v1161 = vmul.f32 %v1033, %v1033
        %v1162 = vmul.f32 %v1034, %v1034
        %v1163 = vmul.f32 %v1035, %v1035
        %v1164 = vmul.f32 %v1036, %v1036
        %v1165 = vmul.f32 %v1037, %v1037
        %v1166 = vmul.f32 %v1038, %v1038
        %v1167 = vmul.f32 %v1039, %v1039
        %v1168 = vmul.f32 %v1040, %v1040
        %v1169 = vmul.f32 %v1041, %v1041
        %v1170 = vadd.f32 %v1106, %v1138
        %v1171 = vadd.f32 %v1107, %v1139
        %v1172 = vadd.f32 %v1108, %v1140
        %v1173 = vadd.f32 %v1109, %v1141
        %v1174 = vadd.f32 %v1110, %v1142
        %v1175 = vadd.f32 %v1111, %v1143
        %v1176 = vadd.f32 %v1112, %v1144
        %v1177 = vadd.f32 %v1113, %v1145
        %v1178 = vadd.f32 %v1114, %v1146
        %v1179 = vadd.f32 %v1115, %v1147
        %v1180 = vadd.f32 %v1116, %v1148
        %v1181 = vadd.f32 %v1117, %v1149
        %v1182 = vadd.f32 %v1118, %v1150
        %v1183 = vadd.f32 %v1119, %v1151
        %v1184 = vadd.f32 %v1120, %v1152
        %v1185 = vadd.f32 %v1121, %v1153
        %v1186 = vadd.f32 %v1122, %v1154
        %v1187 = vadd.f32 %v1123, %v1155
        %v1188 = vadd.f32 %v1124, %v1156
        %v1189 = vadd.f32 %v1125, %v1157
        %v1190 = vadd.f32 %v1126, %v1158
        %v1191 = vadd.f32 %v1127, %v1159
        %v1192 = vadd.f32 %v1128, %v1160
        %v1193 = vadd.f32 %v1129, %v1161
        %v1194 = vadd.f32 %v1130, %v1162
        %v1195 = vadd.f32 %v1131, %v1163
        %v1196 = vadd.f32 %v1132, %v1164
        %v1197 = vadd.f32 %v1133, %v1165
        %v1198 = vadd.f32 %v1134, %v1166
        %v1199 = vadd.f32 %v1135, %v1167
        %v1200 = vadd.f32 %v1136, %v1168
        %v1201 = vadd.f32 %v1137, %v1169
        %v1202 = vmin.f32 %v900, %v1170
        %v1203 = vmin.f32 %v901, %v1171
        %v1204 = vmin.f32 %v902, %v1172
        %v1205 = vmin.f32 %v903, %v1173
        %v1206 = vmin.f32 %v904, %v1174
        %v1207 = vmin.f32 %v905, %v1175
        %v1208 = vmin.f32 %v906, %v1176
        %v1209 = vmin.f32 %v907, %v1177
        %v1210 = vmin.f32 %v908, %v1178
        %v1211 = vmin.f32 %v909, %v1179
        %v1212 = vmin.f32 %v910, %v1180
        %v1213 = vmin.f32 %v911, %v1181
        %v1214 = vmin.f32 %v912, %v1182
        %v1215 = vmin.f32 %v913, %v1183
        %v1216 = vmin.f32 %v914, %v1184
        %v1217 = vmin.f32 %v915, %v1185
        %v1218 = vmin.f32 %v916, %v1186
        %v1219 = vmin.f32 %v917, %v1187
        %v1220 = vmin.f32 %v918, %v1188
        %v1221 = vmin.f32 %v919, %v1189
        %v1222 = vmin.f32 %v920, %v1190
        %v1223 = vmin.f32 %v921, %v1191
        %v1224 = vmin.f32 %v922, %v1192
        %v1225 = vmin.f32 %v923, %v1193
        %v1226 = vmin.f32 %v924, %v1194
        %v1227 = vmin.f32 %v925, %v1195
        %v1228 = vmin.f32 %v926, %v1196
        %v1229 = vmin.f32 %v927, %v1197
        %v1230 = vmin.f32 %v928, %v1198
        %v1231 = vmin.f32 %v929, %v1199
        %v1232 = vmin.f32 %v930, %v1200
        %v1233 = vmin.f32 %v931, %v1201
        %s1234 = scalar_lea.vmem %s176, 8
        %v1235 = vld [vmem:[%s1234] sm:$0x7]
        %v1236 = vlaneseq
        %v1237 = vshrl.u32 %v1236, 7
        %v1238 = vsub.s32 0, %v1237
        %v1239 = vrot.slane %v1235, %v1238
        %v1240 = vsub.f32 %v250, %v1239
        %v1241 = vsub.f32 %v255, %v1239
        %v1242 = vsub.f32 %v260, %v1239
        %v1243 = vsub.f32 %v265, %v1239
        %v1244 = vsub.f32 %v270, %v1239
        %v1245 = vsub.f32 %v275, %v1239
        %v1246 = vsub.f32 %v280, %v1239
        %v1247 = vsub.f32 %v285, %v1239
        %v1248 = vsub.f32 %v290, %v1239
        %v1249 = vsub.f32 %v295, %v1239
        %v1250 = vsub.f32 %v300, %v1239
        %v1251 = vsub.f32 %v305, %v1239
        %v1252 = vsub.f32 %v310, %v1239
        %v1253 = vsub.f32 %v315, %v1239
        %v1254 = vsub.f32 %v320, %v1239
        %v1255 = vsub.f32 %v325, %v1239
        %v1256 = vsub.f32 %v330, %v1239
        %v1257 = vsub.f32 %v335, %v1239
        %v1258 = vsub.f32 %v340, %v1239
        %v1259 = vsub.f32 %v345, %v1239
        %v1260 = vsub.f32 %v350, %v1239
        %v1261 = vsub.f32 %v355, %v1239
        %v1262 = vsub.f32 %v360, %v1239
        %v1263 = vsub.f32 %v365, %v1239
        %v1264 = vsub.f32 %v370, %v1239
        %v1265 = vsub.f32 %v375, %v1239
        %v1266 = vsub.f32 %v380, %v1239
        %v1267 = vsub.f32 %v385, %v1239
        %v1268 = vsub.f32 %v390, %v1239
        %v1269 = vsub.f32 %v395, %v1239
        %v1270 = vsub.f32 %v400, %v1239
        %v1271 = vsub.f32 %v405, %v1239
        %v1272 = vlaneseq
        %v1273 = vshrl.u32 %v1272, 7
        %v1274 = vsub.s32 1, %v1273
        %v1275 = vrot.slane %v1235, %v1274
        %v1276 = vsub.f32 %v409, %v1275
        %v1277 = vsub.f32 %v413, %v1275
        %v1278 = vsub.f32 %v417, %v1275
        %v1279 = vsub.f32 %v421, %v1275
        %v1280 = vsub.f32 %v425, %v1275
        %v1281 = vsub.f32 %v429, %v1275
        %v1282 = vsub.f32 %v433, %v1275
        %v1283 = vsub.f32 %v437, %v1275
        %v1284 = vsub.f32 %v441, %v1275
        %v1285 = vsub.f32 %v445, %v1275
        %v1286 = vsub.f32 %v449, %v1275
        %v1287 = vsub.f32 %v453, %v1275
        %v1288 = vsub.f32 %v457, %v1275
        %v1289 = vsub.f32 %v461, %v1275
        %v1290 = vsub.f32 %v465, %v1275
        %v1291 = vsub.f32 %v469, %v1275
        %v1292 = vsub.f32 %v473, %v1275
        %v1293 = vsub.f32 %v477, %v1275
        %v1294 = vsub.f32 %v481, %v1275
        %v1295 = vsub.f32 %v485, %v1275
        %v1296 = vsub.f32 %v489, %v1275
        %v1297 = vsub.f32 %v493, %v1275
        %v1298 = vsub.f32 %v497, %v1275
        %v1299 = vsub.f32 %v501, %v1275
        %v1300 = vsub.f32 %v505, %v1275
        %v1301 = vsub.f32 %v509, %v1275
        %v1302 = vsub.f32 %v513, %v1275
        %v1303 = vsub.f32 %v517, %v1275
        %v1304 = vsub.f32 %v521, %v1275
        %v1305 = vsub.f32 %v525, %v1275
        %v1306 = vsub.f32 %v529, %v1275
        %v1307 = vsub.f32 %v533, %v1275
        %v1308 = vlaneseq
        %v1309 = vshrl.u32 %v1308, 7
        %v1310 = vsub.s32 2, %v1309
        %v1311 = vrot.slane %v1235, %v1310
        %v1312 = vsub.f32 %v537, %v1311
        %v1313 = vsub.f32 %v541, %v1311
        %v1314 = vsub.f32 %v545, %v1311
        %v1315 = vsub.f32 %v549, %v1311
        %v1316 = vsub.f32 %v553, %v1311
        %v1317 = vsub.f32 %v557, %v1311
        %v1318 = vsub.f32 %v561, %v1311
        %v1319 = vsub.f32 %v565, %v1311
        %v1320 = vsub.f32 %v569, %v1311
        %v1321 = vsub.f32 %v573, %v1311
        %v1322 = vsub.f32 %v577, %v1311
        %v1323 = vsub.f32 %v581, %v1311
        %v1324 = vsub.f32 %v585, %v1311
        %v1325 = vsub.f32 %v589, %v1311
        %v1326 = vsub.f32 %v593, %v1311
        %v1327 = vsub.f32 %v597, %v1311
        %v1328 = vsub.f32 %v601, %v1311
        %v1329 = vsub.f32 %v605, %v1311
        %v1330 = vsub.f32 %v609, %v1311
        %v1331 = vsub.f32 %v613, %v1311
        %v1332 = vsub.f32 %v617, %v1311
        %v1333 = vsub.f32 %v621, %v1311
        %v1334 = vsub.f32 %v625, %v1311
        %v1335 = vsub.f32 %v629, %v1311
        %v1336 = vsub.f32 %v633, %v1311
        %v1337 = vsub.f32 %v637, %v1311
        %v1338 = vsub.f32 %v641, %v1311
        %v1339 = vsub.f32 %v645, %v1311
        %v1340 = vsub.f32 %v649, %v1311
        %v1341 = vsub.f32 %v653, %v1311
        %v1342 = vsub.f32 %v657, %v1311
        %v1343 = vsub.f32 %v661, %v1311
        %v1344 = vmul.f32 %v1240, %v1240
        %v1345 = vmul.f32 %v1241, %v1241
        %v1346 = vmul.f32 %v1242, %v1242
        %v1347 = vmul.f32 %v1243, %v1243
        %v1348 = vmul.f32 %v1244, %v1244
        %v1349 = vmul.f32 %v1245, %v1245
        %v1350 = vmul.f32 %v1246, %v1246
        %v1351 = vmul.f32 %v1247, %v1247
        %v1352 = vmul.f32 %v1248, %v1248
        %v1353 = vmul.f32 %v1249, %v1249
        %v1354 = vmul.f32 %v1250, %v1250
        %v1355 = vmul.f32 %v1251, %v1251
        %v1356 = vmul.f32 %v1252, %v1252
        %v1357 = vmul.f32 %v1253, %v1253
        %v1358 = vmul.f32 %v1254, %v1254
        %v1359 = vmul.f32 %v1255, %v1255
        %v1360 = vmul.f32 %v1256, %v1256
        %v1361 = vmul.f32 %v1257, %v1257
        %v1362 = vmul.f32 %v1258, %v1258
        %v1363 = vmul.f32 %v1259, %v1259
        %v1364 = vmul.f32 %v1260, %v1260
        %v1365 = vmul.f32 %v1261, %v1261
        %v1366 = vmul.f32 %v1262, %v1262
        %v1367 = vmul.f32 %v1263, %v1263
        %v1368 = vmul.f32 %v1264, %v1264
        %v1369 = vmul.f32 %v1265, %v1265
        %v1370 = vmul.f32 %v1266, %v1266
        %v1371 = vmul.f32 %v1267, %v1267
        %v1372 = vmul.f32 %v1268, %v1268
        %v1373 = vmul.f32 %v1269, %v1269
        %v1374 = vmul.f32 %v1270, %v1270
        %v1375 = vmul.f32 %v1271, %v1271
        %v1376 = vmul.f32 %v1276, %v1276
        %v1377 = vmul.f32 %v1277, %v1277
        %v1378 = vmul.f32 %v1278, %v1278
        %v1379 = vmul.f32 %v1279, %v1279
        %v1380 = vmul.f32 %v1280, %v1280
        %v1381 = vmul.f32 %v1281, %v1281
        %v1382 = vmul.f32 %v1282, %v1282
        %v1383 = vmul.f32 %v1283, %v1283
        %v1384 = vmul.f32 %v1284, %v1284
        %v1385 = vmul.f32 %v1285, %v1285
        %v1386 = vmul.f32 %v1286, %v1286
        %v1387 = vmul.f32 %v1287, %v1287
        %v1388 = vmul.f32 %v1288, %v1288
        %v1389 = vmul.f32 %v1289, %v1289
        %v1390 = vmul.f32 %v1290, %v1290
        %v1391 = vmul.f32 %v1291, %v1291
        %v1392 = vmul.f32 %v1292, %v1292
        %v1393 = vmul.f32 %v1293, %v1293
        %v1394 = vmul.f32 %v1294, %v1294
        %v1395 = vmul.f32 %v1295, %v1295
        %v1396 = vmul.f32 %v1296, %v1296
        %v1397 = vmul.f32 %v1297, %v1297
        %v1398 = vmul.f32 %v1298, %v1298
        %v1399 = vmul.f32 %v1299, %v1299
        %v1400 = vmul.f32 %v1300, %v1300
        %v1401 = vmul.f32 %v1301, %v1301
        %v1402 = vmul.f32 %v1302, %v1302
        %v1403 = vmul.f32 %v1303, %v1303
        %v1404 = vmul.f32 %v1304, %v1304
        %v1405 = vmul.f32 %v1305, %v1305
        %v1406 = vmul.f32 %v1306, %v1306
        %v1407 = vmul.f32 %v1307, %v1307
        %v1408 = vadd.f32 %v1344, %v1376
        %v1409 = vadd.f32 %v1345, %v1377
        %v1410 = vadd.f32 %v1346, %v1378
        %v1411 = vadd.f32 %v1347, %v1379
        %v1412 = vadd.f32 %v1348, %v1380
        %v1413 = vadd.f32 %v1349, %v1381
        %v1414 = vadd.f32 %v1350, %v1382
        %v1415 = vadd.f32 %v1351, %v1383
        %v1416 = vadd.f32 %v1352, %v1384
        %v1417 = vadd.f32 %v1353, %v1385
        %v1418 = vadd.f32 %v1354, %v1386
        %v1419 = vadd.f32 %v1355, %v1387
        %v1420 = vadd.f32 %v1356, %v1388
        %v1421 = vadd.f32 %v1357, %v1389
        %v1422 = vadd.f32 %v1358, %v1390
        %v1423 = vadd.f32 %v1359, %v1391
        %v1424 = vadd.f32 %v1360, %v1392
        %v1425 = vadd.f32 %v1361, %v1393
        %v1426 = vadd.f32 %v1362, %v1394
        %v1427 = vadd.f32 %v1363, %v1395
        %v1428 = vadd.f32 %v1364, %v1396
        %v1429 = vadd.f32 %v1365, %v1397
        %v1430 = vadd.f32 %v1366, %v1398
        %v1431 = vadd.f32 %v1367, %v1399
        %v1432 = vadd.f32 %v1368, %v1400
        %v1433 = vadd.f32 %v1369, %v1401
        %v1434 = vadd.f32 %v1370, %v1402
        %v1435 = vadd.f32 %v1371, %v1403
        %v1436 = vadd.f32 %v1372, %v1404
        %v1437 = vadd.f32 %v1373, %v1405
        %v1438 = vadd.f32 %v1374, %v1406
        %v1439 = vadd.f32 %v1375, %v1407
        %v1440 = vmul.f32 %v1312, %v1312
        %v1441 = vmul.f32 %v1313, %v1313
        %v1442 = vmul.f32 %v1314, %v1314
        %v1443 = vmul.f32 %v1315, %v1315
        %v1444 = vmul.f32 %v1316, %v1316
        %v1445 = vmul.f32 %v1317, %v1317
        %v1446 = vmul.f32 %v1318, %v1318
        %v1447 = vmul.f32 %v1319, %v1319
        %v1448 = vmul.f32 %v1320, %v1320
        %v1449 = vmul.f32 %v1321, %v1321
        %v1450 = vmul.f32 %v1322, %v1322
        %v1451 = vmul.f32 %v1323, %v1323
        %v1452 = vmul.f32 %v1324, %v1324
        %v1453 = vmul.f32 %v1325, %v1325
        %v1454 = vmul.f32 %v1326, %v1326
        %v1455 = vmul.f32 %v1327, %v1327
        %v1456 = vmul.f32 %v1328, %v1328
        %v1457 = vmul.f32 %v1329, %v1329
        %v1458 = vmul.f32 %v1330, %v1330
        %v1459 = vmul.f32 %v1331, %v1331
        %v1460 = vmul.f32 %v1332, %v1332
        %v1461 = vmul.f32 %v1333, %v1333
        %v1462 = vmul.f32 %v1334, %v1334
        %v1463 = vmul.f32 %v1335, %v1335
        %v1464 = vmul.f32 %v1336, %v1336
        %v1465 = vmul.f32 %v1337, %v1337
        %v1466 = vmul.f32 %v1338, %v1338
        %v1467 = vmul.f32 %v1339, %v1339
        %v1468 = vmul.f32 %v1340, %v1340
        %v1469 = vmul.f32 %v1341, %v1341
        %v1470 = vmul.f32 %v1342, %v1342
        %v1471 = vmul.f32 %v1343, %v1343
        %v1472 = vadd.f32 %v1408, %v1440
        %v1473 = vadd.f32 %v1409, %v1441
        %v1474 = vadd.f32 %v1410, %v1442
        %v1475 = vadd.f32 %v1411, %v1443
        %v1476 = vadd.f32 %v1412, %v1444
        %v1477 = vadd.f32 %v1413, %v1445
        %v1478 = vadd.f32 %v1414, %v1446
        %v1479 = vadd.f32 %v1415, %v1447
        %v1480 = vadd.f32 %v1416, %v1448
        %v1481 = vadd.f32 %v1417, %v1449
        %v1482 = vadd.f32 %v1418, %v1450
        %v1483 = vadd.f32 %v1419, %v1451
        %v1484 = vadd.f32 %v1420, %v1452
        %v1485 = vadd.f32 %v1421, %v1453
        %v1486 = vadd.f32 %v1422, %v1454
        %v1487 = vadd.f32 %v1423, %v1455
        %v1488 = vadd.f32 %v1424, %v1456
        %v1489 = vadd.f32 %v1425, %v1457
        %v1490 = vadd.f32 %v1426, %v1458
        %v1491 = vadd.f32 %v1427, %v1459
        %v1492 = vadd.f32 %v1428, %v1460
        %v1493 = vadd.f32 %v1429, %v1461
        %v1494 = vadd.f32 %v1430, %v1462
        %v1495 = vadd.f32 %v1431, %v1463
        %v1496 = vadd.f32 %v1432, %v1464
        %v1497 = vadd.f32 %v1433, %v1465
        %v1498 = vadd.f32 %v1434, %v1466
        %v1499 = vadd.f32 %v1435, %v1467
        %v1500 = vadd.f32 %v1436, %v1468
        %v1501 = vadd.f32 %v1437, %v1469
        %v1502 = vadd.f32 %v1438, %v1470
        %v1503 = vadd.f32 %v1439, %v1471
        %v1504 = vmin.f32 %v1202, %v1472
        %v1505 = vmin.f32 %v1203, %v1473
        %v1506 = vmin.f32 %v1204, %v1474
        %v1507 = vmin.f32 %v1205, %v1475
        %v1508 = vmin.f32 %v1206, %v1476
        %v1509 = vmin.f32 %v1207, %v1477
        %v1510 = vmin.f32 %v1208, %v1478
        %v1511 = vmin.f32 %v1209, %v1479
        %v1512 = vmin.f32 %v1210, %v1480
        %v1513 = vmin.f32 %v1211, %v1481
        %v1514 = vmin.f32 %v1212, %v1482
        %v1515 = vmin.f32 %v1213, %v1483
        %v1516 = vmin.f32 %v1214, %v1484
        %v1517 = vmin.f32 %v1215, %v1485
        %v1518 = vmin.f32 %v1216, %v1486
        %v1519 = vmin.f32 %v1217, %v1487
        %v1520 = vmin.f32 %v1218, %v1488
        %v1521 = vmin.f32 %v1219, %v1489
        %v1522 = vmin.f32 %v1220, %v1490
        %v1523 = vmin.f32 %v1221, %v1491
        %v1524 = vmin.f32 %v1222, %v1492
        %v1525 = vmin.f32 %v1223, %v1493
        %v1526 = vmin.f32 %v1224, %v1494
        %v1527 = vmin.f32 %v1225, %v1495
        %v1528 = vmin.f32 %v1226, %v1496
        %v1529 = vmin.f32 %v1227, %v1497
        %v1530 = vmin.f32 %v1228, %v1498
        %v1531 = vmin.f32 %v1229, %v1499
        %v1532 = vmin.f32 %v1230, %v1500
        %v1533 = vmin.f32 %v1231, %v1501
        %v1534 = vmin.f32 %v1232, %v1502
        %v1535 = vmin.f32 %v1233, %v1503
        %s1536 = scalar_lea.vmem %s176, 12
        %v1537 = vld [vmem:[%s1536] sm:$0x7]
        %v1538 = vlaneseq
        %v1539 = vshrl.u32 %v1538, 7
        %v1540 = vsub.s32 0, %v1539
        %v1541 = vrot.slane %v1537, %v1540
        %v1542 = vsub.f32 %v250, %v1541
        %v1543 = vsub.f32 %v255, %v1541
        %v1544 = vsub.f32 %v260, %v1541
        %v1545 = vsub.f32 %v265, %v1541
        %v1546 = vsub.f32 %v270, %v1541
        %v1547 = vsub.f32 %v275, %v1541
        %v1548 = vsub.f32 %v280, %v1541
        %v1549 = vsub.f32 %v285, %v1541
        %v1550 = vsub.f32 %v290, %v1541
        %v1551 = vsub.f32 %v295, %v1541
        %v1552 = vsub.f32 %v300, %v1541
        %v1553 = vsub.f32 %v305, %v1541
        %v1554 = vsub.f32 %v310, %v1541
        %v1555 = vsub.f32 %v315, %v1541
        %v1556 = vsub.f32 %v320, %v1541
        %v1557 = vsub.f32 %v325, %v1541
        %v1558 = vsub.f32 %v330, %v1541
        %v1559 = vsub.f32 %v335, %v1541
        %v1560 = vsub.f32 %v340, %v1541
        %v1561 = vsub.f32 %v345, %v1541
        %v1562 = vsub.f32 %v350, %v1541
        %v1563 = vsub.f32 %v355, %v1541
        %v1564 = vsub.f32 %v360, %v1541
        %v1565 = vsub.f32 %v365, %v1541
        %v1566 = vsub.f32 %v370, %v1541
        %v1567 = vsub.f32 %v375, %v1541
        %v1568 = vsub.f32 %v380, %v1541
        %v1569 = vsub.f32 %v385, %v1541
        %v1570 = vsub.f32 %v390, %v1541
        %v1571 = vsub.f32 %v395, %v1541
        %v1572 = vsub.f32 %v400, %v1541
        %v1573 = vsub.f32 %v405, %v1541
        %v1574 = vlaneseq
        %v1575 = vshrl.u32 %v1574, 7
        %v1576 = vsub.s32 1, %v1575
        %v1577 = vrot.slane %v1537, %v1576
        %v1578 = vsub.f32 %v409, %v1577
        %v1579 = vsub.f32 %v413, %v1577
        %v1580 = vsub.f32 %v417, %v1577
        %v1581 = vsub.f32 %v421, %v1577
        %v1582 = vsub.f32 %v425, %v1577
        %v1583 = vsub.f32 %v429, %v1577
        %v1584 = vsub.f32 %v433, %v1577
        %v1585 = vsub.f32 %v437, %v1577
        %v1586 = vsub.f32 %v441, %v1577
        %v1587 = vsub.f32 %v445, %v1577
        %v1588 = vsub.f32 %v449, %v1577
        %v1589 = vsub.f32 %v453, %v1577
        %v1590 = vsub.f32 %v457, %v1577
        %v1591 = vsub.f32 %v461, %v1577
        %v1592 = vsub.f32 %v465, %v1577
        %v1593 = vsub.f32 %v469, %v1577
        %v1594 = vsub.f32 %v473, %v1577
        %v1595 = vsub.f32 %v477, %v1577
        %v1596 = vsub.f32 %v481, %v1577
        %v1597 = vsub.f32 %v485, %v1577
        %v1598 = vsub.f32 %v489, %v1577
        %v1599 = vsub.f32 %v493, %v1577
        %v1600 = vsub.f32 %v497, %v1577
        %v1601 = vsub.f32 %v501, %v1577
        %v1602 = vsub.f32 %v505, %v1577
        %v1603 = vsub.f32 %v509, %v1577
        %v1604 = vsub.f32 %v513, %v1577
        %v1605 = vsub.f32 %v517, %v1577
        %v1606 = vsub.f32 %v521, %v1577
        %v1607 = vsub.f32 %v525, %v1577
        %v1608 = vsub.f32 %v529, %v1577
        %v1609 = vsub.f32 %v533, %v1577
        %v1610 = vlaneseq
        %v1611 = vshrl.u32 %v1610, 7
        %v1612 = vsub.s32 2, %v1611
        %v1613 = vrot.slane %v1537, %v1612
        %v1614 = vsub.f32 %v537, %v1613
        %v1615 = vsub.f32 %v541, %v1613
        %v1616 = vsub.f32 %v545, %v1613
        %v1617 = vsub.f32 %v549, %v1613
        %v1618 = vsub.f32 %v553, %v1613
        %v1619 = vsub.f32 %v557, %v1613
        %v1620 = vsub.f32 %v561, %v1613
        %v1621 = vsub.f32 %v565, %v1613
        %v1622 = vsub.f32 %v569, %v1613
        %v1623 = vsub.f32 %v573, %v1613
        %v1624 = vsub.f32 %v577, %v1613
        %v1625 = vsub.f32 %v581, %v1613
        %v1626 = vsub.f32 %v585, %v1613
        %v1627 = vsub.f32 %v589, %v1613
        %v1628 = vsub.f32 %v593, %v1613
        %v1629 = vsub.f32 %v597, %v1613
        %v1630 = vsub.f32 %v601, %v1613
        %v1631 = vsub.f32 %v605, %v1613
        %v1632 = vsub.f32 %v609, %v1613
        %v1633 = vsub.f32 %v613, %v1613
        %v1634 = vsub.f32 %v617, %v1613
        %v1635 = vsub.f32 %v621, %v1613
        %v1636 = vsub.f32 %v625, %v1613
        %v1637 = vsub.f32 %v629, %v1613
        %v1638 = vsub.f32 %v633, %v1613
        %v1639 = vsub.f32 %v637, %v1613
        %v1640 = vsub.f32 %v641, %v1613
        %v1641 = vsub.f32 %v645, %v1613
        %v1642 = vsub.f32 %v649, %v1613
        %v1643 = vsub.f32 %v653, %v1613
        %v1644 = vsub.f32 %v657, %v1613
        %v1645 = vsub.f32 %v661, %v1613
        %v1646 = vmul.f32 %v1542, %v1542
        %v1647 = vmul.f32 %v1543, %v1543
        %v1648 = vmul.f32 %v1544, %v1544
        %v1649 = vmul.f32 %v1545, %v1545
        %v1650 = vmul.f32 %v1546, %v1546
        %v1651 = vmul.f32 %v1547, %v1547
        %v1652 = vmul.f32 %v1548, %v1548
        %v1653 = vmul.f32 %v1549, %v1549
        %v1654 = vmul.f32 %v1550, %v1550
        %v1655 = vmul.f32 %v1551, %v1551
        %v1656 = vmul.f32 %v1552, %v1552
        %v1657 = vmul.f32 %v1553, %v1553
        %v1658 = vmul.f32 %v1554, %v1554
        %v1659 = vmul.f32 %v1555, %v1555
        %v1660 = vmul.f32 %v1556, %v1556
        %v1661 = vmul.f32 %v1557, %v1557
        %v1662 = vmul.f32 %v1558, %v1558
        %v1663 = vmul.f32 %v1559, %v1559
        %v1664 = vmul.f32 %v1560, %v1560
        %v1665 = vmul.f32 %v1561, %v1561
        %v1666 = vmul.f32 %v1562, %v1562
        %v1667 = vmul.f32 %v1563, %v1563
        %v1668 = vmul.f32 %v1564, %v1564
        %v1669 = vmul.f32 %v1565, %v1565
        %v1670 = vmul.f32 %v1566, %v1566
        %v1671 = vmul.f32 %v1567, %v1567
        %v1672 = vmul.f32 %v1568, %v1568
        %v1673 = vmul.f32 %v1569, %v1569
        %v1674 = vmul.f32 %v1570, %v1570
        %v1675 = vmul.f32 %v1571, %v1571
        %v1676 = vmul.f32 %v1572, %v1572
        %v1677 = vmul.f32 %v1573, %v1573
        %v1678 = vmul.f32 %v1578, %v1578
        %v1679 = vmul.f32 %v1579, %v1579
        %v1680 = vmul.f32 %v1580, %v1580
        %v1681 = vmul.f32 %v1581, %v1581
        %v1682 = vmul.f32 %v1582, %v1582
        %v1683 = vmul.f32 %v1583, %v1583
        %v1684 = vmul.f32 %v1584, %v1584
        %v1685 = vmul.f32 %v1585, %v1585
        %v1686 = vmul.f32 %v1586, %v1586
        %v1687 = vmul.f32 %v1587, %v1587
        %v1688 = vmul.f32 %v1588, %v1588
        %v1689 = vmul.f32 %v1589, %v1589
        %v1690 = vmul.f32 %v1590, %v1590
        %v1691 = vmul.f32 %v1591, %v1591
        %v1692 = vmul.f32 %v1592, %v1592
        %v1693 = vmul.f32 %v1593, %v1593
        %v1694 = vmul.f32 %v1594, %v1594
        %v1695 = vmul.f32 %v1595, %v1595
        %v1696 = vmul.f32 %v1596, %v1596
        %v1697 = vmul.f32 %v1597, %v1597
        %v1698 = vmul.f32 %v1598, %v1598
        %v1699 = vmul.f32 %v1599, %v1599
        %v1700 = vmul.f32 %v1600, %v1600
        %v1701 = vmul.f32 %v1601, %v1601
        %v1702 = vmul.f32 %v1602, %v1602
        %v1703 = vmul.f32 %v1603, %v1603
        %v1704 = vmul.f32 %v1604, %v1604
        %v1705 = vmul.f32 %v1605, %v1605
        %v1706 = vmul.f32 %v1606, %v1606
        %v1707 = vmul.f32 %v1607, %v1607
        %v1708 = vmul.f32 %v1608, %v1608
        %v1709 = vmul.f32 %v1609, %v1609
        %v1710 = vadd.f32 %v1646, %v1678
        %v1711 = vadd.f32 %v1647, %v1679
        %v1712 = vadd.f32 %v1648, %v1680
        %v1713 = vadd.f32 %v1649, %v1681
        %v1714 = vadd.f32 %v1650, %v1682
        %v1715 = vadd.f32 %v1651, %v1683
        %v1716 = vadd.f32 %v1652, %v1684
        %v1717 = vadd.f32 %v1653, %v1685
        %v1718 = vadd.f32 %v1654, %v1686
        %v1719 = vadd.f32 %v1655, %v1687
        %v1720 = vadd.f32 %v1656, %v1688
        %v1721 = vadd.f32 %v1657, %v1689
        %v1722 = vadd.f32 %v1658, %v1690
        %v1723 = vadd.f32 %v1659, %v1691
        %v1724 = vadd.f32 %v1660, %v1692
        %v1725 = vadd.f32 %v1661, %v1693
        %v1726 = vadd.f32 %v1662, %v1694
        %v1727 = vadd.f32 %v1663, %v1695
        %v1728 = vadd.f32 %v1664, %v1696
        %v1729 = vadd.f32 %v1665, %v1697
        %v1730 = vadd.f32 %v1666, %v1698
        %v1731 = vadd.f32 %v1667, %v1699
        %v1732 = vadd.f32 %v1668, %v1700
        %v1733 = vadd.f32 %v1669, %v1701
        %v1734 = vadd.f32 %v1670, %v1702
        %v1735 = vadd.f32 %v1671, %v1703
        %v1736 = vadd.f32 %v1672, %v1704
        %v1737 = vadd.f32 %v1673, %v1705
        %v1738 = vadd.f32 %v1674, %v1706
        %v1739 = vadd.f32 %v1675, %v1707
        %v1740 = vadd.f32 %v1676, %v1708
        %v1741 = vadd.f32 %v1677, %v1709
        %v1742 = vmul.f32 %v1614, %v1614
        %v1743 = vmul.f32 %v1615, %v1615
        %v1744 = vmul.f32 %v1616, %v1616
        %v1745 = vmul.f32 %v1617, %v1617
        %v1746 = vmul.f32 %v1618, %v1618
        %v1747 = vmul.f32 %v1619, %v1619
        %v1748 = vmul.f32 %v1620, %v1620
        %v1749 = vmul.f32 %v1621, %v1621
        %v1750 = vmul.f32 %v1622, %v1622
        %v1751 = vmul.f32 %v1623, %v1623
        %v1752 = vmul.f32 %v1624, %v1624
        %v1753 = vmul.f32 %v1625, %v1625
        %v1754 = vmul.f32 %v1626, %v1626
        %v1755 = vmul.f32 %v1627, %v1627
        %v1756 = vmul.f32 %v1628, %v1628
        %v1757 = vmul.f32 %v1629, %v1629
        %v1758 = vmul.f32 %v1630, %v1630
        %v1759 = vmul.f32 %v1631, %v1631
        %v1760 = vmul.f32 %v1632, %v1632
        %v1761 = vmul.f32 %v1633, %v1633
        %v1762 = vmul.f32 %v1634, %v1634
        %v1763 = vmul.f32 %v1635, %v1635
        %v1764 = vmul.f32 %v1636, %v1636
        %v1765 = vmul.f32 %v1637, %v1637
        %v1766 = vmul.f32 %v1638, %v1638
        %v1767 = vmul.f32 %v1639, %v1639
        %v1768 = vmul.f32 %v1640, %v1640
        %v1769 = vmul.f32 %v1641, %v1641
        %v1770 = vmul.f32 %v1642, %v1642
        %v1771 = vmul.f32 %v1643, %v1643
        %v1772 = vmul.f32 %v1644, %v1644
        %v1773 = vmul.f32 %v1645, %v1645
        %v1774 = vadd.f32 %v1710, %v1742
        %v1775 = vadd.f32 %v1711, %v1743
        %v1776 = vadd.f32 %v1712, %v1744
        %v1777 = vadd.f32 %v1713, %v1745
        %v1778 = vadd.f32 %v1714, %v1746
        %v1779 = vadd.f32 %v1715, %v1747
        %v1780 = vadd.f32 %v1716, %v1748
        %v1781 = vadd.f32 %v1717, %v1749
        %v1782 = vadd.f32 %v1718, %v1750
        %v1783 = vadd.f32 %v1719, %v1751
        %v1784 = vadd.f32 %v1720, %v1752
        %v1785 = vadd.f32 %v1721, %v1753
        %v1786 = vadd.f32 %v1722, %v1754
        %v1787 = vadd.f32 %v1723, %v1755
        %v1788 = vadd.f32 %v1724, %v1756
        %v1789 = vadd.f32 %v1725, %v1757
        %v1790 = vadd.f32 %v1726, %v1758
        %v1791 = vadd.f32 %v1727, %v1759
        %v1792 = vadd.f32 %v1728, %v1760
        %v1793 = vadd.f32 %v1729, %v1761
        %v1794 = vadd.f32 %v1730, %v1762
        %v1795 = vadd.f32 %v1731, %v1763
        %v1796 = vadd.f32 %v1732, %v1764
        %v1797 = vadd.f32 %v1733, %v1765
        %v1798 = vadd.f32 %v1734, %v1766
        %v1799 = vadd.f32 %v1735, %v1767
        %v1800 = vadd.f32 %v1736, %v1768
        %v1801 = vadd.f32 %v1737, %v1769
        %v1802 = vadd.f32 %v1738, %v1770
        %v1803 = vadd.f32 %v1739, %v1771
        %v1804 = vadd.f32 %v1740, %v1772
        %v1805 = vadd.f32 %v1741, %v1773
        %v1806 = vmin.f32 %v1504, %v1774
        %v1807 = vmin.f32 %v1505, %v1775
        %v1808 = vmin.f32 %v1506, %v1776
        %v1809 = vmin.f32 %v1507, %v1777
        %v1810 = vmin.f32 %v1508, %v1778
        %v1811 = vmin.f32 %v1509, %v1779
        %v1812 = vmin.f32 %v1510, %v1780
        %v1813 = vmin.f32 %v1511, %v1781
        %v1814 = vmin.f32 %v1512, %v1782
        %v1815 = vmin.f32 %v1513, %v1783
        %v1816 = vmin.f32 %v1514, %v1784
        %v1817 = vmin.f32 %v1515, %v1785
        %v1818 = vmin.f32 %v1516, %v1786
        %v1819 = vmin.f32 %v1517, %v1787
        %v1820 = vmin.f32 %v1518, %v1788
        %v1821 = vmin.f32 %v1519, %v1789
        %v1822 = vmin.f32 %v1520, %v1790
        %v1823 = vmin.f32 %v1521, %v1791
        %v1824 = vmin.f32 %v1522, %v1792
        %v1825 = vmin.f32 %v1523, %v1793
        %v1826 = vmin.f32 %v1524, %v1794
        %v1827 = vmin.f32 %v1525, %v1795
        %v1828 = vmin.f32 %v1526, %v1796
        %v1829 = vmin.f32 %v1527, %v1797
        %v1830 = vmin.f32 %v1528, %v1798
        %v1831 = vmin.f32 %v1529, %v1799
        %v1832 = vmin.f32 %v1530, %v1800
        %v1833 = vmin.f32 %v1531, %v1801
        %v1834 = vmin.f32 %v1532, %v1802
        %v1835 = vmin.f32 %v1533, %v1803
        %v1836 = vmin.f32 %v1534, %v1804
        %v1837 = vmin.f32 %v1535, %v1805
        %s1838 = scalar_lea.vmem %s176, 16
        %v1839 = vld [vmem:[%s1838] sm:$0x7]
        %v1840 = vlaneseq
        %v1841 = vshrl.u32 %v1840, 7
        %v1842 = vsub.s32 0, %v1841
        %v1843 = vrot.slane %v1839, %v1842
        %v1844 = vsub.f32 %v250, %v1843
        %v1845 = vsub.f32 %v255, %v1843
        %v1846 = vsub.f32 %v260, %v1843
        %v1847 = vsub.f32 %v265, %v1843
        %v1848 = vsub.f32 %v270, %v1843
        %v1849 = vsub.f32 %v275, %v1843
        %v1850 = vsub.f32 %v280, %v1843
        %v1851 = vsub.f32 %v285, %v1843
        %v1852 = vsub.f32 %v290, %v1843
        %v1853 = vsub.f32 %v295, %v1843
        %v1854 = vsub.f32 %v300, %v1843
        %v1855 = vsub.f32 %v305, %v1843
        %v1856 = vsub.f32 %v310, %v1843
        %v1857 = vsub.f32 %v315, %v1843
        %v1858 = vsub.f32 %v320, %v1843
        %v1859 = vsub.f32 %v325, %v1843
        %v1860 = vsub.f32 %v330, %v1843
        %v1861 = vsub.f32 %v335, %v1843
        %v1862 = vsub.f32 %v340, %v1843
        %v1863 = vsub.f32 %v345, %v1843
        %v1864 = vsub.f32 %v350, %v1843
        %v1865 = vsub.f32 %v355, %v1843
        %v1866 = vsub.f32 %v360, %v1843
        %v1867 = vsub.f32 %v365, %v1843
        %v1868 = vsub.f32 %v370, %v1843
        %v1869 = vsub.f32 %v375, %v1843
        %v1870 = vsub.f32 %v380, %v1843
        %v1871 = vsub.f32 %v385, %v1843
        %v1872 = vsub.f32 %v390, %v1843
        %v1873 = vsub.f32 %v395, %v1843
        %v1874 = vsub.f32 %v400, %v1843
        %v1875 = vsub.f32 %v405, %v1843
        %v1876 = vlaneseq
        %v1877 = vshrl.u32 %v1876, 7
        %v1878 = vsub.s32 1, %v1877
        %v1879 = vrot.slane %v1839, %v1878
        %v1880 = vsub.f32 %v409, %v1879
        %v1881 = vsub.f32 %v413, %v1879
        %v1882 = vsub.f32 %v417, %v1879
        %v1883 = vsub.f32 %v421, %v1879
        %v1884 = vsub.f32 %v425, %v1879
        %v1885 = vsub.f32 %v429, %v1879
        %v1886 = vsub.f32 %v433, %v1879
        %v1887 = vsub.f32 %v437, %v1879
        %v1888 = vsub.f32 %v441, %v1879
        %v1889 = vsub.f32 %v445, %v1879
        %v1890 = vsub.f32 %v449, %v1879
        %v1891 = vsub.f32 %v453, %v1879
        %v1892 = vsub.f32 %v457, %v1879
        %v1893 = vsub.f32 %v461, %v1879
        %v1894 = vsub.f32 %v465, %v1879
        %v1895 = vsub.f32 %v469, %v1879
        %v1896 = vsub.f32 %v473, %v1879
        %v1897 = vsub.f32 %v477, %v1879
        %v1898 = vsub.f32 %v481, %v1879
        %v1899 = vsub.f32 %v485, %v1879
        %v1900 = vsub.f32 %v489, %v1879
        %v1901 = vsub.f32 %v493, %v1879
        %v1902 = vsub.f32 %v497, %v1879
        %v1903 = vsub.f32 %v501, %v1879
        %v1904 = vsub.f32 %v505, %v1879
        %v1905 = vsub.f32 %v509, %v1879
        %v1906 = vsub.f32 %v513, %v1879
        %v1907 = vsub.f32 %v517, %v1879
        %v1908 = vsub.f32 %v521, %v1879
        %v1909 = vsub.f32 %v525, %v1879
        %v1910 = vsub.f32 %v529, %v1879
        %v1911 = vsub.f32 %v533, %v1879
        %v1912 = vlaneseq
        %v1913 = vshrl.u32 %v1912, 7
        %v1914 = vsub.s32 2, %v1913
        %v1915 = vrot.slane %v1839, %v1914
        %v1916 = vsub.f32 %v537, %v1915
        %v1917 = vsub.f32 %v541, %v1915
        %v1918 = vsub.f32 %v545, %v1915
        %v1919 = vsub.f32 %v549, %v1915
        %v1920 = vsub.f32 %v553, %v1915
        %v1921 = vsub.f32 %v557, %v1915
        %v1922 = vsub.f32 %v561, %v1915
        %v1923 = vsub.f32 %v565, %v1915
        %v1924 = vsub.f32 %v569, %v1915
        %v1925 = vsub.f32 %v573, %v1915
        %v1926 = vsub.f32 %v577, %v1915
        %v1927 = vsub.f32 %v581, %v1915
        %v1928 = vsub.f32 %v585, %v1915
        %v1929 = vsub.f32 %v589, %v1915
        %v1930 = vsub.f32 %v593, %v1915
        %v1931 = vsub.f32 %v597, %v1915
        %v1932 = vsub.f32 %v601, %v1915
        %v1933 = vsub.f32 %v605, %v1915
        %v1934 = vsub.f32 %v609, %v1915
        %v1935 = vsub.f32 %v613, %v1915
        %v1936 = vsub.f32 %v617, %v1915
        %v1937 = vsub.f32 %v621, %v1915
        %v1938 = vsub.f32 %v625, %v1915
        %v1939 = vsub.f32 %v629, %v1915
        %v1940 = vsub.f32 %v633, %v1915
        %v1941 = vsub.f32 %v637, %v1915
        %v1942 = vsub.f32 %v641, %v1915
        %v1943 = vsub.f32 %v645, %v1915
        %v1944 = vsub.f32 %v649, %v1915
        %v1945 = vsub.f32 %v653, %v1915
        %v1946 = vsub.f32 %v657, %v1915
        %v1947 = vsub.f32 %v661, %v1915
        %v1948 = vmul.f32 %v1844, %v1844
        %v1949 = vmul.f32 %v1845, %v1845
        %v1950 = vmul.f32 %v1846, %v1846
        %v1951 = vmul.f32 %v1847, %v1847
        %v1952 = vmul.f32 %v1848, %v1848
        %v1953 = vmul.f32 %v1849, %v1849
        %v1954 = vmul.f32 %v1850, %v1850
        %v1955 = vmul.f32 %v1851, %v1851
        %v1956 = vmul.f32 %v1852, %v1852
        %v1957 = vmul.f32 %v1853, %v1853
        %v1958 = vmul.f32 %v1854, %v1854
        %v1959 = vmul.f32 %v1855, %v1855
        %v1960 = vmul.f32 %v1856, %v1856
        %v1961 = vmul.f32 %v1857, %v1857
        %v1962 = vmul.f32 %v1858, %v1858
        %v1963 = vmul.f32 %v1859, %v1859
        %v1964 = vmul.f32 %v1860, %v1860
        %v1965 = vmul.f32 %v1861, %v1861
        %v1966 = vmul.f32 %v1862, %v1862
        %v1967 = vmul.f32 %v1863, %v1863
        %v1968 = vmul.f32 %v1864, %v1864
        %v1969 = vmul.f32 %v1865, %v1865
        %v1970 = vmul.f32 %v1866, %v1866
        %v1971 = vmul.f32 %v1867, %v1867
        %v1972 = vmul.f32 %v1868, %v1868
        %v1973 = vmul.f32 %v1869, %v1869
        %v1974 = vmul.f32 %v1870, %v1870
        %v1975 = vmul.f32 %v1871, %v1871
        %v1976 = vmul.f32 %v1872, %v1872
        %v1977 = vmul.f32 %v1873, %v1873
        %v1978 = vmul.f32 %v1874, %v1874
        %v1979 = vmul.f32 %v1875, %v1875
        %v1980 = vmul.f32 %v1880, %v1880
        %v1981 = vmul.f32 %v1881, %v1881
        %v1982 = vmul.f32 %v1882, %v1882
        %v1983 = vmul.f32 %v1883, %v1883
        %v1984 = vmul.f32 %v1884, %v1884
        %v1985 = vmul.f32 %v1885, %v1885
        %v1986 = vmul.f32 %v1886, %v1886
        %v1987 = vmul.f32 %v1887, %v1887
        %v1988 = vmul.f32 %v1888, %v1888
        %v1989 = vmul.f32 %v1889, %v1889
        %v1990 = vmul.f32 %v1890, %v1890
        %v1991 = vmul.f32 %v1891, %v1891
        %v1992 = vmul.f32 %v1892, %v1892
        %v1993 = vmul.f32 %v1893, %v1893
        %v1994 = vmul.f32 %v1894, %v1894
        %v1995 = vmul.f32 %v1895, %v1895
        %v1996 = vmul.f32 %v1896, %v1896
        %v1997 = vmul.f32 %v1897, %v1897
        %v1998 = vmul.f32 %v1898, %v1898
        %v1999 = vmul.f32 %v1899, %v1899
        %v2000 = vmul.f32 %v1900, %v1900
        %v2001 = vmul.f32 %v1901, %v1901
        %v2002 = vmul.f32 %v1902, %v1902
        %v2003 = vmul.f32 %v1903, %v1903
        %v2004 = vmul.f32 %v1904, %v1904
        %v2005 = vmul.f32 %v1905, %v1905
        %v2006 = vmul.f32 %v1906, %v1906
        %v2007 = vmul.f32 %v1907, %v1907
        %v2008 = vmul.f32 %v1908, %v1908
        %v2009 = vmul.f32 %v1909, %v1909
        %v2010 = vmul.f32 %v1910, %v1910
        %v2011 = vmul.f32 %v1911, %v1911
        %v2012 = vadd.f32 %v1948, %v1980
        %v2013 = vadd.f32 %v1949, %v1981
        %v2014 = vadd.f32 %v1950, %v1982
        %v2015 = vadd.f32 %v1951, %v1983
        %v2016 = vadd.f32 %v1952, %v1984
        %v2017 = vadd.f32 %v1953, %v1985
        %v2018 = vadd.f32 %v1954, %v1986
        %v2019 = vadd.f32 %v1955, %v1987
        %v2020 = vadd.f32 %v1956, %v1988
        %v2021 = vadd.f32 %v1957, %v1989
        %v2022 = vadd.f32 %v1958, %v1990
        %v2023 = vadd.f32 %v1959, %v1991
        %v2024 = vadd.f32 %v1960, %v1992
        %v2025 = vadd.f32 %v1961, %v1993
        %v2026 = vadd.f32 %v1962, %v1994
        %v2027 = vadd.f32 %v1963, %v1995
        %v2028 = vadd.f32 %v1964, %v1996
        %v2029 = vadd.f32 %v1965, %v1997
        %v2030 = vadd.f32 %v1966, %v1998
        %v2031 = vadd.f32 %v1967, %v1999
        %v2032 = vadd.f32 %v1968, %v2000
        %v2033 = vadd.f32 %v1969, %v2001
        %v2034 = vadd.f32 %v1970, %v2002
        %v2035 = vadd.f32 %v1971, %v2003
        %v2036 = vadd.f32 %v1972, %v2004
        %v2037 = vadd.f32 %v1973, %v2005
        %v2038 = vadd.f32 %v1974, %v2006
        %v2039 = vadd.f32 %v1975, %v2007
        %v2040 = vadd.f32 %v1976, %v2008
        %v2041 = vadd.f32 %v1977, %v2009
        %v2042 = vadd.f32 %v1978, %v2010
        %v2043 = vadd.f32 %v1979, %v2011
        %v2044 = vmul.f32 %v1916, %v1916
        %v2045 = vmul.f32 %v1917, %v1917
        %v2046 = vmul.f32 %v1918, %v1918
        %v2047 = vmul.f32 %v1919, %v1919
        %v2048 = vmul.f32 %v1920, %v1920
        %v2049 = vmul.f32 %v1921, %v1921
        %v2050 = vmul.f32 %v1922, %v1922
        %v2051 = vmul.f32 %v1923, %v1923
        %v2052 = vmul.f32 %v1924, %v1924
        %v2053 = vmul.f32 %v1925, %v1925
        %v2054 = vmul.f32 %v1926, %v1926
        %v2055 = vmul.f32 %v1927, %v1927
        %v2056 = vmul.f32 %v1928, %v1928
        %v2057 = vmul.f32 %v1929, %v1929
        %v2058 = vmul.f32 %v1930, %v1930
        %v2059 = vmul.f32 %v1931, %v1931
        %v2060 = vmul.f32 %v1932, %v1932
        %v2061 = vmul.f32 %v1933, %v1933
        %v2062 = vmul.f32 %v1934, %v1934
        %v2063 = vmul.f32 %v1935, %v1935
        %v2064 = vmul.f32 %v1936, %v1936
        %v2065 = vmul.f32 %v1937, %v1937
        %v2066 = vmul.f32 %v1938, %v1938
        %v2067 = vmul.f32 %v1939, %v1939
        %v2068 = vmul.f32 %v1940, %v1940
        %v2069 = vmul.f32 %v1941, %v1941
        %v2070 = vmul.f32 %v1942, %v1942
        %v2071 = vmul.f32 %v1943, %v1943
        %v2072 = vmul.f32 %v1944, %v1944
        %v2073 = vmul.f32 %v1945, %v1945
        %v2074 = vmul.f32 %v1946, %v1946
        %v2075 = vmul.f32 %v1947, %v1947
        %v2076 = vadd.f32 %v2012, %v2044
        %v2077 = vadd.f32 %v2013, %v2045
        %v2078 = vadd.f32 %v2014, %v2046
        %v2079 = vadd.f32 %v2015, %v2047
        %v2080 = vadd.f32 %v2016, %v2048
        %v2081 = vadd.f32 %v2017, %v2049
        %v2082 = vadd.f32 %v2018, %v2050
        %v2083 = vadd.f32 %v2019, %v2051
        %v2084 = vadd.f32 %v2020, %v2052
        %v2085 = vadd.f32 %v2021, %v2053
        %v2086 = vadd.f32 %v2022, %v2054
        %v2087 = vadd.f32 %v2023, %v2055
        %v2088 = vadd.f32 %v2024, %v2056
        %v2089 = vadd.f32 %v2025, %v2057
        %v2090 = vadd.f32 %v2026, %v2058
        %v2091 = vadd.f32 %v2027, %v2059
        %v2092 = vadd.f32 %v2028, %v2060
        %v2093 = vadd.f32 %v2029, %v2061
        %v2094 = vadd.f32 %v2030, %v2062
        %v2095 = vadd.f32 %v2031, %v2063
        %v2096 = vadd.f32 %v2032, %v2064
        %v2097 = vadd.f32 %v2033, %v2065
        %v2098 = vadd.f32 %v2034, %v2066
        %v2099 = vadd.f32 %v2035, %v2067
        %v2100 = vadd.f32 %v2036, %v2068
        %v2101 = vadd.f32 %v2037, %v2069
        %v2102 = vadd.f32 %v2038, %v2070
        %v2103 = vadd.f32 %v2039, %v2071
        %v2104 = vadd.f32 %v2040, %v2072
        %v2105 = vadd.f32 %v2041, %v2073
        %v2106 = vadd.f32 %v2042, %v2074
        %v2107 = vadd.f32 %v2043, %v2075
        %v2108 = vmin.f32 %v1806, %v2076
        %v2109 = vmin.f32 %v1807, %v2077
        %v2110 = vmin.f32 %v1808, %v2078
        %v2111 = vmin.f32 %v1809, %v2079
        %v2112 = vmin.f32 %v1810, %v2080
        %v2113 = vmin.f32 %v1811, %v2081
        %v2114 = vmin.f32 %v1812, %v2082
        %v2115 = vmin.f32 %v1813, %v2083
        %v2116 = vmin.f32 %v1814, %v2084
        %v2117 = vmin.f32 %v1815, %v2085
        %v2118 = vmin.f32 %v1816, %v2086
        %v2119 = vmin.f32 %v1817, %v2087
        %v2120 = vmin.f32 %v1818, %v2088
        %v2121 = vmin.f32 %v1819, %v2089
        %v2122 = vmin.f32 %v1820, %v2090
        %v2123 = vmin.f32 %v1821, %v2091
        %v2124 = vmin.f32 %v1822, %v2092
        %v2125 = vmin.f32 %v1823, %v2093
        %v2126 = vmin.f32 %v1824, %v2094
        %v2127 = vmin.f32 %v1825, %v2095
        %v2128 = vmin.f32 %v1826, %v2096
        %v2129 = vmin.f32 %v1827, %v2097
        %v2130 = vmin.f32 %v1828, %v2098
        %v2131 = vmin.f32 %v1829, %v2099
        %v2132 = vmin.f32 %v1830, %v2100
        %v2133 = vmin.f32 %v1831, %v2101
        %v2134 = vmin.f32 %v1832, %v2102
        %v2135 = vmin.f32 %v1833, %v2103
        %v2136 = vmin.f32 %v1834, %v2104
        %v2137 = vmin.f32 %v1835, %v2105
        %v2138 = vmin.f32 %v1836, %v2106
        %v2139 = vmin.f32 %v1837, %v2107
        %s2140 = scalar_lea.vmem %s176, 20
        %v2141 = vld [vmem:[%s2140] sm:$0x7]
        %v2142 = vlaneseq
        %v2143 = vshrl.u32 %v2142, 7
        %v2144 = vsub.s32 0, %v2143
        %v2145 = vrot.slane %v2141, %v2144
        %v2146 = vsub.f32 %v250, %v2145
        %v2147 = vsub.f32 %v255, %v2145
        %v2148 = vsub.f32 %v260, %v2145
        %v2149 = vsub.f32 %v265, %v2145
        %v2150 = vsub.f32 %v270, %v2145
        %v2151 = vsub.f32 %v275, %v2145
        %v2152 = vsub.f32 %v280, %v2145
        %v2153 = vsub.f32 %v285, %v2145
        %v2154 = vsub.f32 %v290, %v2145
        %v2155 = vsub.f32 %v295, %v2145
        %v2156 = vsub.f32 %v300, %v2145
        %v2157 = vsub.f32 %v305, %v2145
        %v2158 = vsub.f32 %v310, %v2145
        %v2159 = vsub.f32 %v315, %v2145
        %v2160 = vsub.f32 %v320, %v2145
        %v2161 = vsub.f32 %v325, %v2145
        %v2162 = vsub.f32 %v330, %v2145
        %v2163 = vsub.f32 %v335, %v2145
        %v2164 = vsub.f32 %v340, %v2145
        %v2165 = vsub.f32 %v345, %v2145
        %v2166 = vsub.f32 %v350, %v2145
        %v2167 = vsub.f32 %v355, %v2145
        %v2168 = vsub.f32 %v360, %v2145
        %v2169 = vsub.f32 %v365, %v2145
        %v2170 = vsub.f32 %v370, %v2145
        %v2171 = vsub.f32 %v375, %v2145
        %v2172 = vsub.f32 %v380, %v2145
        %v2173 = vsub.f32 %v385, %v2145
        %v2174 = vsub.f32 %v390, %v2145
        %v2175 = vsub.f32 %v395, %v2145
        %v2176 = vsub.f32 %v400, %v2145
        %v2177 = vsub.f32 %v405, %v2145
        %v2178 = vlaneseq
        %v2179 = vshrl.u32 %v2178, 7
        %v2180 = vsub.s32 1, %v2179
        %v2181 = vrot.slane %v2141, %v2180
        %v2182 = vsub.f32 %v409, %v2181
        %v2183 = vsub.f32 %v413, %v2181
        %v2184 = vsub.f32 %v417, %v2181
        %v2185 = vsub.f32 %v421, %v2181
        %v2186 = vsub.f32 %v425, %v2181
        %v2187 = vsub.f32 %v429, %v2181
        %v2188 = vsub.f32 %v433, %v2181
        %v2189 = vsub.f32 %v437, %v2181
        %v2190 = vsub.f32 %v441, %v2181
        %v2191 = vsub.f32 %v445, %v2181
        %v2192 = vsub.f32 %v449, %v2181
        %v2193 = vsub.f32 %v453, %v2181
        %v2194 = vsub.f32 %v457, %v2181
        %v2195 = vsub.f32 %v461, %v2181
        %v2196 = vsub.f32 %v465, %v2181
        %v2197 = vsub.f32 %v469, %v2181
        %v2198 = vsub.f32 %v473, %v2181
        %v2199 = vsub.f32 %v477, %v2181
        %v2200 = vsub.f32 %v481, %v2181
        %v2201 = vsub.f32 %v485, %v2181
        %v2202 = vsub.f32 %v489, %v2181
        %v2203 = vsub.f32 %v493, %v2181
        %v2204 = vsub.f32 %v497, %v2181
        %v2205 = vsub.f32 %v501, %v2181
        %v2206 = vsub.f32 %v505, %v2181
        %v2207 = vsub.f32 %v509, %v2181
        %v2208 = vsub.f32 %v513, %v2181
        %v2209 = vsub.f32 %v517, %v2181
        %v2210 = vsub.f32 %v521, %v2181
        %v2211 = vsub.f32 %v525, %v2181
        %v2212 = vsub.f32 %v529, %v2181
        %v2213 = vsub.f32 %v533, %v2181
        %v2214 = vlaneseq
        %v2215 = vshrl.u32 %v2214, 7
        %v2216 = vsub.s32 2, %v2215
        %v2217 = vrot.slane %v2141, %v2216
        %v2218 = vsub.f32 %v537, %v2217
        %v2219 = vsub.f32 %v541, %v2217
        %v2220 = vsub.f32 %v545, %v2217
        %v2221 = vsub.f32 %v549, %v2217
        %v2222 = vsub.f32 %v553, %v2217
        %v2223 = vsub.f32 %v557, %v2217
        %v2224 = vsub.f32 %v561, %v2217
        %v2225 = vsub.f32 %v565, %v2217
        %v2226 = vsub.f32 %v569, %v2217
        %v2227 = vsub.f32 %v573, %v2217
        %v2228 = vsub.f32 %v577, %v2217
        %v2229 = vsub.f32 %v581, %v2217
        %v2230 = vsub.f32 %v585, %v2217
        %v2231 = vsub.f32 %v589, %v2217
        %v2232 = vsub.f32 %v593, %v2217
        %v2233 = vsub.f32 %v597, %v2217
        %v2234 = vsub.f32 %v601, %v2217
        %v2235 = vsub.f32 %v605, %v2217
        %v2236 = vsub.f32 %v609, %v2217
        %v2237 = vsub.f32 %v613, %v2217
        %v2238 = vsub.f32 %v617, %v2217
        %v2239 = vsub.f32 %v621, %v2217
        %v2240 = vsub.f32 %v625, %v2217
        %v2241 = vsub.f32 %v629, %v2217
        %v2242 = vsub.f32 %v633, %v2217
        %v2243 = vsub.f32 %v637, %v2217
        %v2244 = vsub.f32 %v641, %v2217
        %v2245 = vsub.f32 %v645, %v2217
        %v2246 = vsub.f32 %v649, %v2217
        %v2247 = vsub.f32 %v653, %v2217
        %v2248 = vsub.f32 %v657, %v2217
        %v2249 = vsub.f32 %v661, %v2217
        %v2250 = vmul.f32 %v2146, %v2146
        %v2251 = vmul.f32 %v2147, %v2147
        %v2252 = vmul.f32 %v2148, %v2148
        %v2253 = vmul.f32 %v2149, %v2149
        %v2254 = vmul.f32 %v2150, %v2150
        %v2255 = vmul.f32 %v2151, %v2151
        %v2256 = vmul.f32 %v2152, %v2152
        %v2257 = vmul.f32 %v2153, %v2153
        %v2258 = vmul.f32 %v2154, %v2154
        %v2259 = vmul.f32 %v2155, %v2155
        %v2260 = vmul.f32 %v2156, %v2156
        %v2261 = vmul.f32 %v2157, %v2157
        %v2262 = vmul.f32 %v2158, %v2158
        %v2263 = vmul.f32 %v2159, %v2159
        %v2264 = vmul.f32 %v2160, %v2160
        %v2265 = vmul.f32 %v2161, %v2161
        %v2266 = vmul.f32 %v2162, %v2162
        %v2267 = vmul.f32 %v2163, %v2163
        %v2268 = vmul.f32 %v2164, %v2164
        %v2269 = vmul.f32 %v2165, %v2165
        %v2270 = vmul.f32 %v2166, %v2166
        %v2271 = vmul.f32 %v2167, %v2167
        %v2272 = vmul.f32 %v2168, %v2168
        %v2273 = vmul.f32 %v2169, %v2169
        %v2274 = vmul.f32 %v2170, %v2170
        %v2275 = vmul.f32 %v2171, %v2171
        %v2276 = vmul.f32 %v2172, %v2172
        %v2277 = vmul.f32 %v2173, %v2173
        %v2278 = vmul.f32 %v2174, %v2174
        %v2279 = vmul.f32 %v2175, %v2175
        %v2280 = vmul.f32 %v2176, %v2176
        %v2281 = vmul.f32 %v2177, %v2177
        %v2282 = vmul.f32 %v2182, %v2182
        %v2283 = vmul.f32 %v2183, %v2183
        %v2284 = vmul.f32 %v2184, %v2184
        %v2285 = vmul.f32 %v2185, %v2185
        %v2286 = vmul.f32 %v2186, %v2186
        %v2287 = vmul.f32 %v2187, %v2187
        %v2288 = vmul.f32 %v2188, %v2188
        %v2289 = vmul.f32 %v2189, %v2189
        %v2290 = vmul.f32 %v2190, %v2190
        %v2291 = vmul.f32 %v2191, %v2191
        %v2292 = vmul.f32 %v2192, %v2192
        %v2293 = vmul.f32 %v2193, %v2193
        %v2294 = vmul.f32 %v2194, %v2194
        %v2295 = vmul.f32 %v2195, %v2195
        %v2296 = vmul.f32 %v2196, %v2196
        %v2297 = vmul.f32 %v2197, %v2197
        %v2298 = vmul.f32 %v2198, %v2198
        %v2299 = vmul.f32 %v2199, %v2199
        %v2300 = vmul.f32 %v2200, %v2200
        %v2301 = vmul.f32 %v2201, %v2201
        %v2302 = vmul.f32 %v2202, %v2202
        %v2303 = vmul.f32 %v2203, %v2203
        %v2304 = vmul.f32 %v2204, %v2204
        %v2305 = vmul.f32 %v2205, %v2205
        %v2306 = vmul.f32 %v2206, %v2206
        %v2307 = vmul.f32 %v2207, %v2207
        %v2308 = vmul.f32 %v2208, %v2208
        %v2309 = vmul.f32 %v2209, %v2209
        %v2310 = vmul.f32 %v2210, %v2210
        %v2311 = vmul.f32 %v2211, %v2211
        %v2312 = vmul.f32 %v2212, %v2212
        %v2313 = vmul.f32 %v2213, %v2213
        %v2314 = vadd.f32 %v2250, %v2282
        %v2315 = vadd.f32 %v2251, %v2283
        %v2316 = vadd.f32 %v2252, %v2284
        %v2317 = vadd.f32 %v2253, %v2285
        %v2318 = vadd.f32 %v2254, %v2286
        %v2319 = vadd.f32 %v2255, %v2287
        %v2320 = vadd.f32 %v2256, %v2288
        %v2321 = vadd.f32 %v2257, %v2289
        %v2322 = vadd.f32 %v2258, %v2290
        %v2323 = vadd.f32 %v2259, %v2291
        %v2324 = vadd.f32 %v2260, %v2292
        %v2325 = vadd.f32 %v2261, %v2293
        %v2326 = vadd.f32 %v2262, %v2294
        %v2327 = vadd.f32 %v2263, %v2295
        %v2328 = vadd.f32 %v2264, %v2296
        %v2329 = vadd.f32 %v2265, %v2297
        %v2330 = vadd.f32 %v2266, %v2298
        %v2331 = vadd.f32 %v2267, %v2299
        %v2332 = vadd.f32 %v2268, %v2300
        %v2333 = vadd.f32 %v2269, %v2301
        %v2334 = vadd.f32 %v2270, %v2302
        %v2335 = vadd.f32 %v2271, %v2303
        %v2336 = vadd.f32 %v2272, %v2304
        %v2337 = vadd.f32 %v2273, %v2305
        %v2338 = vadd.f32 %v2274, %v2306
        %v2339 = vadd.f32 %v2275, %v2307
        %v2340 = vadd.f32 %v2276, %v2308
        %v2341 = vadd.f32 %v2277, %v2309
        %v2342 = vadd.f32 %v2278, %v2310
        %v2343 = vadd.f32 %v2279, %v2311
        %v2344 = vadd.f32 %v2280, %v2312
        %v2345 = vadd.f32 %v2281, %v2313
        %v2346 = vmul.f32 %v2218, %v2218
        %v2347 = vmul.f32 %v2219, %v2219
        %v2348 = vmul.f32 %v2220, %v2220
        %v2349 = vmul.f32 %v2221, %v2221
        %v2350 = vmul.f32 %v2222, %v2222
        %v2351 = vmul.f32 %v2223, %v2223
        %v2352 = vmul.f32 %v2224, %v2224
        %v2353 = vmul.f32 %v2225, %v2225
        %v2354 = vmul.f32 %v2226, %v2226
        %v2355 = vmul.f32 %v2227, %v2227
        %v2356 = vmul.f32 %v2228, %v2228
        %v2357 = vmul.f32 %v2229, %v2229
        %v2358 = vmul.f32 %v2230, %v2230
        %v2359 = vmul.f32 %v2231, %v2231
        %v2360 = vmul.f32 %v2232, %v2232
        %v2361 = vmul.f32 %v2233, %v2233
        %v2362 = vmul.f32 %v2234, %v2234
        %v2363 = vmul.f32 %v2235, %v2235
        %v2364 = vmul.f32 %v2236, %v2236
        %v2365 = vmul.f32 %v2237, %v2237
        %v2366 = vmul.f32 %v2238, %v2238
        %v2367 = vmul.f32 %v2239, %v2239
        %v2368 = vmul.f32 %v2240, %v2240
        %v2369 = vmul.f32 %v2241, %v2241
        %v2370 = vmul.f32 %v2242, %v2242
        %v2371 = vmul.f32 %v2243, %v2243
        %v2372 = vmul.f32 %v2244, %v2244
        %v2373 = vmul.f32 %v2245, %v2245
        %v2374 = vmul.f32 %v2246, %v2246
        %v2375 = vmul.f32 %v2247, %v2247
        %v2376 = vmul.f32 %v2248, %v2248
        %v2377 = vmul.f32 %v2249, %v2249
        %v2378 = vadd.f32 %v2314, %v2346
        %v2379 = vadd.f32 %v2315, %v2347
        %v2380 = vadd.f32 %v2316, %v2348
        %v2381 = vadd.f32 %v2317, %v2349
        %v2382 = vadd.f32 %v2318, %v2350
        %v2383 = vadd.f32 %v2319, %v2351
        %v2384 = vadd.f32 %v2320, %v2352
        %v2385 = vadd.f32 %v2321, %v2353
        %v2386 = vadd.f32 %v2322, %v2354
        %v2387 = vadd.f32 %v2323, %v2355
        %v2388 = vadd.f32 %v2324, %v2356
        %v2389 = vadd.f32 %v2325, %v2357
        %v2390 = vadd.f32 %v2326, %v2358
        %v2391 = vadd.f32 %v2327, %v2359
        %v2392 = vadd.f32 %v2328, %v2360
        %v2393 = vadd.f32 %v2329, %v2361
        %v2394 = vadd.f32 %v2330, %v2362
        %v2395 = vadd.f32 %v2331, %v2363
        %v2396 = vadd.f32 %v2332, %v2364
        %v2397 = vadd.f32 %v2333, %v2365
        %v2398 = vadd.f32 %v2334, %v2366
        %v2399 = vadd.f32 %v2335, %v2367
        %v2400 = vadd.f32 %v2336, %v2368
        %v2401 = vadd.f32 %v2337, %v2369
        %v2402 = vadd.f32 %v2338, %v2370
        %v2403 = vadd.f32 %v2339, %v2371
        %v2404 = vadd.f32 %v2340, %v2372
        %v2405 = vadd.f32 %v2341, %v2373
        %v2406 = vadd.f32 %v2342, %v2374
        %v2407 = vadd.f32 %v2343, %v2375
        %v2408 = vadd.f32 %v2344, %v2376
        %v2409 = vadd.f32 %v2345, %v2377
        %v2410 = vmin.f32 %v2108, %v2378
        %v2411 = vmin.f32 %v2109, %v2379
        %v2412 = vmin.f32 %v2110, %v2380
        %v2413 = vmin.f32 %v2111, %v2381
        %v2414 = vmin.f32 %v2112, %v2382
        %v2415 = vmin.f32 %v2113, %v2383
        %v2416 = vmin.f32 %v2114, %v2384
        %v2417 = vmin.f32 %v2115, %v2385
        %v2418 = vmin.f32 %v2116, %v2386
        %v2419 = vmin.f32 %v2117, %v2387
        %v2420 = vmin.f32 %v2118, %v2388
        %v2421 = vmin.f32 %v2119, %v2389
        %v2422 = vmin.f32 %v2120, %v2390
        %v2423 = vmin.f32 %v2121, %v2391
        %v2424 = vmin.f32 %v2122, %v2392
        %v2425 = vmin.f32 %v2123, %v2393
        %v2426 = vmin.f32 %v2124, %v2394
        %v2427 = vmin.f32 %v2125, %v2395
        %v2428 = vmin.f32 %v2126, %v2396
        %v2429 = vmin.f32 %v2127, %v2397
        %v2430 = vmin.f32 %v2128, %v2398
        %v2431 = vmin.f32 %v2129, %v2399
        %v2432 = vmin.f32 %v2130, %v2400
        %v2433 = vmin.f32 %v2131, %v2401
        %v2434 = vmin.f32 %v2132, %v2402
        %v2435 = vmin.f32 %v2133, %v2403
        %v2436 = vmin.f32 %v2134, %v2404
        %v2437 = vmin.f32 %v2135, %v2405
        %v2438 = vmin.f32 %v2136, %v2406
        %v2439 = vmin.f32 %v2137, %v2407
        %v2440 = vmin.f32 %v2138, %v2408
        %v2441 = vmin.f32 %v2139, %v2409
        %v2442 = vld [vmem:[%s165] sm:$0xff]
        %v2443 = vld [vmem:[%s165 + $0x8] sm:$0xff]
        %v2444 = vld [vmem:[%s165 + $0x10] sm:$0xff]
        %v2445 = vld [vmem:[%s165 + $0x18] sm:$0xff]
        %v2446 = vld [vmem:[%s165 + $0x20] sm:$0xff]
        %v2447 = vld [vmem:[%s165 + $0x28] sm:$0xff]
        %v2448 = vld [vmem:[%s165 + $0x30] sm:$0xff]
        %v2449 = vld [vmem:[%s165 + $0x38] sm:$0xff]
        %v2450 = vld [vmem:[%s165 + $0x40] sm:$0xff]
        %v2451 = vld [vmem:[%s165 + $0x48] sm:$0xff]
        %v2452 = vld [vmem:[%s165 + $0x50] sm:$0xff]
        %v2453 = vld [vmem:[%s165 + $0x58] sm:$0xff]
        %v2454 = vld [vmem:[%s165 + $0x60] sm:$0xff]
        %v2455 = vld [vmem:[%s165 + $0x68] sm:$0xff]
        %v2456 = vld [vmem:[%s165 + $0x70] sm:$0xff]
        %v2457 = vld [vmem:[%s165 + $0x78] sm:$0xff]
        %v2458 = vld [vmem:[%s165 + $0x80] sm:$0xff]
        %v2459 = vld [vmem:[%s165 + $0x88] sm:$0xff]
        %v2460 = vld [vmem:[%s165 + $0x90] sm:$0xff]
        %v2461 = vld [vmem:[%s165 + $0x98] sm:$0xff]
        %v2462 = vld [vmem:[%s165 + $0xa0] sm:$0xff]
        %v2463 = vld [vmem:[%s165 + $0xa8] sm:$0xff]
        %v2464 = vld [vmem:[%s165 + $0xb0] sm:$0xff]
        %v2465 = vld [vmem:[%s165 + $0xb8] sm:$0xff]
        %v2466 = vld [vmem:[%s165 + $0xc0] sm:$0xff]
        %v2467 = vld [vmem:[%s165 + $0xc8] sm:$0xff]
        %v2468 = vld [vmem:[%s165 + $0xd0] sm:$0xff]
        %v2469 = vld [vmem:[%s165 + $0xd8] sm:$0xff]
        %v2470 = vld [vmem:[%s165 + $0xe0] sm:$0xff]
        %v2471 = vld [vmem:[%s165 + $0xe8] sm:$0xff]
        %v2472 = vld [vmem:[%s165 + $0xf0] sm:$0xff]
        %v2473 = vld [vmem:[%s165 + $0xf8] sm:$0xff]
        %v2474 = vmin.f32 %v2442, %v2410
        %v2475 = vmin.f32 %v2443, %v2411
        %v2476 = vmin.f32 %v2444, %v2412
        %v2477 = vmin.f32 %v2445, %v2413
        %v2478 = vmin.f32 %v2446, %v2414
        %v2479 = vmin.f32 %v2447, %v2415
        %v2480 = vmin.f32 %v2448, %v2416
        %v2481 = vmin.f32 %v2449, %v2417
        %v2482 = vmin.f32 %v2450, %v2418
        %v2483 = vmin.f32 %v2451, %v2419
        %v2484 = vmin.f32 %v2452, %v2420
        %v2485 = vmin.f32 %v2453, %v2421
        %v2486 = vmin.f32 %v2454, %v2422
        %v2487 = vmin.f32 %v2455, %v2423
        %v2488 = vmin.f32 %v2456, %v2424
        %v2489 = vmin.f32 %v2457, %v2425
        %v2490 = vmin.f32 %v2458, %v2426
        %v2491 = vmin.f32 %v2459, %v2427
        %v2492 = vmin.f32 %v2460, %v2428
        %v2493 = vmin.f32 %v2461, %v2429
        %v2494 = vmin.f32 %v2462, %v2430
        %v2495 = vmin.f32 %v2463, %v2431
        %v2496 = vmin.f32 %v2464, %v2432
        %v2497 = vmin.f32 %v2465, %v2433
        %v2498 = vmin.f32 %v2466, %v2434
        %v2499 = vmin.f32 %v2467, %v2435
        %v2500 = vmin.f32 %v2468, %v2436
        %v2501 = vmin.f32 %v2469, %v2437
        %v2502 = vmin.f32 %v2470, %v2438
        %v2503 = vmin.f32 %v2471, %v2439
        %v2504 = vmin.f32 %v2472, %v2440
        %v2505 = vmin.f32 %v2473, %v2441
        %2506 = vst [vmem:[%s165] sm:$0xff] %v2474
        %2507 = vst [vmem:[%s165 + $0x8] sm:$0xff] %v2475
        %2508 = vst [vmem:[%s165 + $0x10] sm:$0xff] %v2476
        %2509 = vst [vmem:[%s165 + $0x18] sm:$0xff] %v2477
        %2510 = vst [vmem:[%s165 + $0x20] sm:$0xff] %v2478
        %2511 = vst [vmem:[%s165 + $0x28] sm:$0xff] %v2479
        %2512 = vst [vmem:[%s165 + $0x30] sm:$0xff] %v2480
        %2513 = vst [vmem:[%s165 + $0x38] sm:$0xff] %v2481
        %2514 = vst [vmem:[%s165 + $0x40] sm:$0xff] %v2482
        %2515 = vst [vmem:[%s165 + $0x48] sm:$0xff] %v2483
        %2516 = vst [vmem:[%s165 + $0x50] sm:$0xff] %v2484
        %2517 = vst [vmem:[%s165 + $0x58] sm:$0xff] %v2485
        %2518 = vst [vmem:[%s165 + $0x60] sm:$0xff] %v2486
        %2519 = vst [vmem:[%s165 + $0x68] sm:$0xff] %v2487
        %2520 = vst [vmem:[%s165 + $0x70] sm:$0xff] %v2488
        %2521 = vst [vmem:[%s165 + $0x78] sm:$0xff] %v2489
        %2522 = vst [vmem:[%s165 + $0x80] sm:$0xff] %v2490
        %2523 = vst [vmem:[%s165 + $0x88] sm:$0xff] %v2491
        %2524 = vst [vmem:[%s165 + $0x90] sm:$0xff] %v2492
        %2525 = vst [vmem:[%s165 + $0x98] sm:$0xff] %v2493
        %2526 = vst [vmem:[%s165 + $0xa0] sm:$0xff] %v2494
        %2527 = vst [vmem:[%s165 + $0xa8] sm:$0xff] %v2495
        %2528 = vst [vmem:[%s165 + $0xb0] sm:$0xff] %v2496
        %2529 = vst [vmem:[%s165 + $0xb8] sm:$0xff] %v2497
        %2530 = vst [vmem:[%s165 + $0xc0] sm:$0xff] %v2498
        %2531 = vst [vmem:[%s165 + $0xc8] sm:$0xff] %v2499
        %2532 = vst [vmem:[%s165 + $0xd0] sm:$0xff] %v2500
        %2533 = vst [vmem:[%s165 + $0xd8] sm:$0xff] %v2501
        %2534 = vst [vmem:[%s165 + $0xe0] sm:$0xff] %v2502
        %2535 = vst [vmem:[%s165 + $0xe8] sm:$0xff] %v2503
        %2536 = vst [vmem:[%s165 + $0xf0] sm:$0xff] %v2504
        %2537 = vst [vmem:[%s165 + $0xf8] sm:$0xff] %v2505
        %s2538 = sand.u32 %s88, 1
        %s2539 = scalar_lea.sflag [#allocation3], %s2538
        %s2540 = sand.u32 %s88, 1
        %s2541 = smul.addr %s2540, 256
        %s2542 = scalar_lea.vmem [#allocation2], %s2541
        // Predicated region
        $region33: #{tpu_custom_call.1} parent=27 // pred_check
          %p2543 = pneg %p98
        $region34: #{tpu_custom_call.1} parent=27 // pred_check_branch
          %2545 = sbr.rel (%p2543) target = $region36
        $region35: #{tpu_custom_call.1} parent=27 // pred_region
          %s2546 = smul.u32 32, %s20
          %s2548 = ssub.s32 4096, 4096
          %2549 = vsyncadd %s2539, %s2548
          %s2550 = smul.addr %s2546, 128
          %s2551 = scalar_lea.hbm %s2, %s2550
          %s2552 = sshll.u32 %s2542, 4
          %s2553 = int_to_ptr.vmem [resolvable:$true] %s2552
          %2558 = dma.vmem_to_hbm [thread:$0]  %s2553, 4096, %s2551, %s2539, 128, 128, 8
        $region36: #{tpu_custom_call.1} parent=27 // pred_fallthru
          _
      $region28: #{tpu_custom_call.1} parent=5 // pred_fallthru
        _
      %p2559 = scmp.le.s32.totalorder 2, %s11
      // Predicated region
      $region37: #{tpu_custom_call.1} parent=5 // pred_check
        %p2560 = pneg %p2559
      $region38: #{tpu_custom_call.1} parent=5 // pred_check_branch
        %2562 = sbr.rel (%p2560) target = $region40
      $region39: #{tpu_custom_call.1} parent=5 // pred_region
        %s2563 = ssub.s32 %s11, 2
        // Predicated region
        $region41: #{tpu_custom_call.1} parent=39 // pred_check
          %p2564 = pneg %p104
        $region42: #{tpu_custom_call.1} parent=39 // pred_check_branch
          %2566 = sbr.rel (%p2564) target = $region44
        $region43: #{tpu_custom_call.1} parent=39 // pred_region
          %s2567 = sand.u32 %s89, 1
          %s2568 = scalar_lea.sflag [#allocation3], %s2567
          %s2569 = sand.u32 %s89, 1
          %s2570 = smul.addr %s2569, 256
          %s2571 = scalar_lea.vmem [#allocation2], %s2570
          %2572 = dma.done %s2568, 4096
        $region44: #{tpu_custom_call.1} parent=39 // pred_fallthru
          _
      $region40: #{tpu_custom_call.1} parent=5 // pred_fallthru
        _
    $region6: #{tpu_custom_call.1} parent=1 // loop_footer
      %s15 = sadd.s32 1, %s11
    $region7: #{tpu_custom_call.1} parent=1 // loop_footer_branch
      %10 = sbr.rel target = $region3
    $region8: #{tpu_custom_call.1} parent=1 // loop_exit
      _
    %2573 = vsyncpa [#allocation3], 1
    %s2574 = scalar_lea.sflag [#allocation3], 1
    %2575 = vsyncpa %s2574, 1

</llo_original>
